<compile_context>
chip_gen: v7x
topology: tpu7x:2x2x1
jax: 0.10.0
libtpu: 0.0.40
codegen_flags: <defaults>
</compile_context>

<pallas_src>
import functools

import jax
import jax.numpy as jnp
from jax import lax
from jax.experimental import pallas as pl
from jax.experimental.pallas import tpu as pltpu


def _layernorm(x, gamma, beta, eps=1e-5):
    mu = jnp.mean(x, axis=-1, keepdims=True)
    var = jnp.mean((x - mu) ** 2, axis=-1, keepdims=True)
    return (x - mu) * lax.rsqrt(var + eps) * gamma + beta


def block_kernel(x_ref, wq_ref, wk_ref, wv_ref, wp_ref, bp_ref,
                 g1_ref, b1_ref, wf1_ref, bf1_ref, wf2_ref, bf2_ref,
                 o_ref, *, n_head, head_size):
    Bt, T, C = x_ref.shape
    H, hs = n_head, head_size
    scale = float(hs) ** -0.5

    # Flatten (Bt, T, C) -> (Bt*T, C): projections / FFN see M = Bt*T rows per
    # matmul instead of T, so the MXU is actually occupied.
    x = x_ref[...].reshape(Bt * T, C)
    xb = x.astype(jnp.bfloat16)

    # Fused lane-dense Q/K/V projections; attention scale applied to q once
    # (T*H*hs multiplies total instead of H*T*T per-score scaling).
    q = jnp.dot(xb, wq_ref[...], preferred_element_type=jnp.float32) * scale
    k = jnp.dot(xb, wk_ref[...], preferred_element_type=jnp.float32)
    v = jnp.dot(xb, wv_ref[...], preferred_element_type=jnp.float32)
    qb = q.astype(jnp.bfloat16).reshape(Bt, T, H * hs)
    kb = k.astype(jnp.bfloat16).reshape(Bt, T, H * hs)
    vb = v.astype(jnp.bfloat16).reshape(Bt, T, H * hs)

    # Causal mask, hoisted out of the head loop; finite fill avoids any
    # exp(-inf - -inf) NaN hazard. Broadcast over the batch tile.
    row = lax.broadcasted_iota(jnp.int32, (T, T), 0)
    col = lax.broadcasted_iota(jnp.int32, (T, T), 1)
    causal = (row >= col)[None]                                  # (1, T, T)

    # Per-head attention; each head's output is pushed through its slice of
    # the output projection and accumulated in f32 (no concat scratch).
    sa = jnp.zeros((Bt * T, C), jnp.float32)
    # TODO(synk): for many heads / large T, switch to lax.fori_loop(unroll=True)
    # to bound live ranges and add a flash-style KV grid axis; H=4, T=8 here.
    for h in range(H):
        lo = h * hs
        qh = qb[:, :, lo:lo + hs]                                # (Bt, T, hs)
        kh = kb[:, :, lo:lo + hs]
        vh = vb[:, :, lo:lo + hs]
        s = jnp.einsum('bqd,bkd->bqk', qh, kh,
                       preferred_element_type=jnp.float32)       # (Bt, T, T)
        s = jnp.where(causal, s, -1e30)
        m = jnp.max(s, axis=-1, keepdims=True)
        p = jnp.exp(s - m)                                       # unnormalized
        l = jnp.sum(p, axis=-1, keepdims=True)
        # TODO(synk): nn.Dropout(0.2) on attention weights -> identity (eval).
        pv = jnp.einsum('bqk,bkd->bqd', p.astype(jnp.bfloat16), vh,
                        preferred_element_type=jnp.float32)      # (Bt, T, hs)
        out_h = (pv * pl.reciprocal(l, approx=True)).reshape(Bt * T, hs)
        sa = sa + jnp.dot(out_h.astype(jnp.bfloat16), wp_ref[lo:lo + hs, :],
                          preferred_element_type=jnp.float32)    # (Bt*T, C)
    # TODO(synk): nn.Dropout(0.2) after the projection -> identity (eval).

    g1 = g1_ref[...]
    b1 = b1_ref[...]

    # x = ln1(x + sa(x))
    x1 = _layernorm(x + sa + bp_ref[...], g1, b1)

    # FeedForward: Linear(C,4C) -> ReLU -> Linear(4C,C); bias adds fused.
    hid = jnp.maximum(
        jnp.dot(x1.astype(jnp.bfloat16), wf1_ref[...],
                preferred_element_type=jnp.float32) + bf1_ref[...], 0.0)
    ff = jnp.dot(hid.astype(jnp.bfloat16), wf2_ref[...],
                 preferred_element_type=jnp.float32)
    # TODO(synk): nn.Dropout(0.2) in FeedForward -> identity (eval).

    # NOTE: reference Block applies ln1 again (ln2 exists but is never used).
    out = _layernorm(x1 + ff + bf2_ref[...], g1, b1)
    o_ref[...] = out.reshape(Bt, T, C).astype(o_ref.dtype)


def block_forward(x, params, n_head, batch_tile=None):
    """x: (B, T, C) float32. params as produced by init_params."""
    B, T, C = x.shape
    wq, wk, wv, wp, bp, g1, b1, wf1, bf1, wf2, bf2 = params
    hs_total = wq.shape[1]
    head_size = hs_total // n_head

    # Batch several sequences per grid step so each step moves >= ~512 rows
    # (amortizes the ~0.35 us per-step overhead and fills the MXU M dim).
    if batch_tile is None:
        batch_tile = max(1, min(B, pl.cdiv(512, T)))
    while B % batch_tile:                     # pick a divisor of B
        batch_tile -= 1
    Bt = batch_tile

    def full_spec(a):
        nd = a.ndim
        return pl.BlockSpec(a.shape, lambda b, _nd=nd: (0,) * _nd)

    kernel = functools.partial(block_kernel, n_head=n_head, head_size=head_size)

    return pl.pallas_call(
        kernel,
        out_shape=jax.ShapeDtypeStruct((B, T, C), x.dtype),
        grid=(B // Bt,),
        in_specs=[pl.BlockSpec((Bt, T, C), lambda b: (b, 0, 0)),
                  full_spec(wq), full_spec(wk), full_spec(wv),
                  full_spec(wp), full_spec(bp),
                  full_spec(g1), full_spec(b1),
                  full_spec(wf1), full_spec(bf1),
                  full_spec(wf2), full_spec(bf2)],
        out_specs=pl.BlockSpec((Bt, T, C), lambda b: (b, 0, 0)),
        compiler_params=pltpu.CompilerParams(
            # Batch-tile steps are independent.
            # TODO(synk): on v7x, pltpu.CORE_PARALLEL / pl.core_map gives true
            # 2-TensorCore splitting; kept portable here.
            dimension_semantics=("parallel",)),
        # vmem_limit_bytes intentionally NOT set: the real footprint (bf16
        # weights + double-buffered (Bt,T,C) tiles) is a few MiB, well under
        # the default scoped limit on v5e/v6e/v7x.
    )(x, wq, wk, wv, wp, bp, g1, b1, wf1, bf1, wf2, bf2)


def init_params(key, n_embd, n_head):
    head_size = n_embd // n_head
    hs_total = n_head * head_size
    ks = jax.random.split(key, 8)
    s = 0.05
    f32, bf16 = jnp.float32, jnp.bfloat16
    # Per-head K/Q/V weights fused into lane-dense (C, H*hs) slabs; column
    # block h is head h, matching torch.cat([h(x) for h in heads], dim=-1).
    wq = (jax.random.normal(ks[0], (n_embd, hs_total), f32) * s).astype(bf16)
    wk = (jax.random.normal(ks[1], (n_embd, hs_total), f32) * s).astype(bf16)
    wv = (jax.random.normal(ks[2], (n_embd, hs_total), f32) * s).astype(bf16)
    wp = (jax.random.normal(ks[3], (hs_total, n_embd), f32) * s).astype(bf16)
    bp = jax.random.normal(ks[4], (1, n_embd), f32) * s
    g1 = jnp.ones((1, n_embd), f32)        # ln1 weight
    b1 = jnp.zeros((1, n_embd), f32)       # ln1 bias
    wf1 = (jax.random.normal(ks[5], (n_embd, 4 * n_embd), f32) * s).astype(bf16)
    bf1 = jax.random.normal(ks[6], (1, 4 * n_embd), f32) * s
    wf2 = (jax.random.normal(ks[7], (4 * n_embd, n_embd), f32) * s).astype(bf16)
    bf2 = jnp.zeros((1, n_embd), f32)
    return (wq, wk, wv, wp, bp, g1, b1, wf1, bf1, wf2, bf2)


def block_reference(x, params, n_head):
    """Pure-JAX f32 reference mirroring the PyTorch forward (eval mode)."""
    wq, wk, wv, wp, bp, g1, b1, wf1, bf1, wf2, bf2 = params
    f32 = jnp.float32
    wq, wk, wv, wp, wf1, wf2 = (w.astype(f32) for w in (wq, wk, wv, wp, wf1, wf2))
    B, T, C = x.shape
    hs = wq.shape[1] // n_head
    mask = jnp.tril(jnp.ones((T, T), bool))

    q = (x @ wq).reshape(B, T, n_head, hs)
    k = (x @ wk).reshape(B, T, n_head, hs)
    v = (x @ wv).reshape(B, T, n_head, hs)
    wei = jnp.einsum('bqhd,bkhd->bhqk', q, k) * hs ** -0.5
    wei = jnp.where(mask, wei, -jnp.inf)
    wei = jax.nn.softmax(wei, axis=-1)
    out = jnp.einsum('bhqk,bkhd->bqhd', wei, v).reshape(B, T, n_head * hs)
    sa = out @ wp + bp

    def ln(z):
        mu = z.mean(-1, keepdims=True)
        var = ((z - mu) ** 2).mean(-1, keepdims=True)
        return (z - mu) / jnp.sqrt(var + 1e-5) * g1 + b1

    x1 = ln(x + sa)
    ff = jnp.maximum(x1 @ wf1 + bf1, 0.0) @ wf2 + bf2
    return ln(x1 + ff)


if __name__ == "__main__":
    # Small shapes consistent with the module's (B, T, n_embd) activations.
    # (Real module: n_embd=256, n_head=12, block_size=64 — the lane-dense
    # out_spec / 128-aligned-head-padding notes apply there, not at C=32.)
    n_embd, n_head, block_size, batch = 32, 4, 8, 2

    key = jax.random.PRNGKey(0)
    kx, kp = jax.random.split(key)
    x = jax.random.normal(kx, (batch, block_size, n_embd), jnp.float32)
    params = init_params(kp, n_embd, n_head)

    out = jax.block_until_ready(block_forward(x, params, n_head))
    ref = block_reference(x, params, n_head)

    assert out.shape == (batch, block_size, n_embd)
    # bf16 MXU inputs (f32 accumulation) vs. the f32 reference: ~1e-2-level
    # mismatch at worst, well inside 2e-2.
    err = float(jnp.max(jnp.abs(out - ref)))
    assert jnp.allclose(out, ref, atol=2e-2, rtol=2e-2), f"max abs err = {err}"
    print("KERNEL_OK")
</pallas_src>

<mosaic_0001>
module attributes {stable_mosaic.version = 11 : i64} {
  func.func @block_kernel(%arg0: i32, %arg1: memref<2x8x32xf32, #tpu.memory_space<vmem>>, %arg2: memref<32x32xbf16, #tpu.memory_space<vmem>>, %arg3: memref<32x32xbf16, #tpu.memory_space<vmem>>, %arg4: memref<32x32xbf16, #tpu.memory_space<vmem>>, %arg5: memref<32x32xbf16, #tpu.memory_space<vmem>>, %arg6: memref<1x32xf32, #tpu.memory_space<vmem>>, %arg7: memref<1x32xf32, #tpu.memory_space<vmem>>, %arg8: memref<1x32xf32, #tpu.memory_space<vmem>>, %arg9: memref<32x128xbf16, #tpu.memory_space<vmem>>, %arg10: memref<1x128xf32, #tpu.memory_space<vmem>>, %arg11: memref<128x32xbf16, #tpu.memory_space<vmem>>, %arg12: memref<1x32xf32, #tpu.memory_space<vmem>>, %arg13: memref<2x8x32xf32, #tpu.memory_space<vmem>>) attributes {dimension_semantics = [#tpu.dimension_semantics<parallel>], iteration_bounds = array<i64: 1>, scalar_prefetch = 0 : i64, scratch_operands = 0 : i64, tpu.core_type = #tpu.core_type<tc>, window_params = [{transform_indices = @transform_0, window_bounds = array<i64: 2, 8, 32>}, {pipeline_mode = #tpu.pipeline_mode<synchronous>, transform_indices = @transform_1, window_bounds = array<i64: 32, 32>}, {pipeline_mode = #tpu.pipeline_mode<synchronous>, transform_indices = @transform_2, window_bounds = array<i64: 32, 32>}, {pipeline_mode = #tpu.pipeline_mode<synchronous>, transform_indices = @transform_3, window_bounds = array<i64: 32, 32>}, {pipeline_mode = #tpu.pipeline_mode<synchronous>, transform_indices = @transform_4, window_bounds = array<i64: 32, 32>}, {pipeline_mode = #tpu.pipeline_mode<synchronous>, transform_indices = @transform_5, window_bounds = array<i64: 1, 32>}, {pipeline_mode = #tpu.pipeline_mode<synchronous>, transform_indices = @transform_6, window_bounds = array<i64: 1, 32>}, {pipeline_mode = #tpu.pipeline_mode<synchronous>, transform_indices = @transform_7, window_bounds = array<i64: 1, 32>}, {pipeline_mode = #tpu.pipeline_mode<synchronous>, transform_indices = @transform_8, window_bounds = array<i64: 32, 128>}, {pipeline_mode = #tpu.pipeline_mode<synchronous>, transform_indices = @transform_9, window_bounds = array<i64: 1, 128>}, {pipeline_mode = #tpu.pipeline_mode<synchronous>, transform_indices = @transform_10, window_bounds = array<i64: 128, 32>}, {pipeline_mode = #tpu.pipeline_mode<synchronous>, transform_indices = @transform_11, window_bounds = array<i64: 1, 32>}, {transform_indices = @transform_12, window_bounds = array<i64: 2, 8, 32>}]} {
    %c0 = arith.constant 0 : index
    %c0_0 = arith.constant 0 : index
    %c0_1 = arith.constant 0 : index
    %0 = vector.load %arg1[%c0, %c0_0, %c0_1] : memref<2x8x32xf32, #tpu.memory_space<vmem>>, vector<2x8x32xf32>
    %1 = vector.shape_cast %0 : vector<2x8x32xf32> to vector<16x32xf32>
    %2 = arith.truncf %1 : vector<16x32xf32> to vector<16x32xbf16>
    %c0_2 = arith.constant 0 : index
    %c0_3 = arith.constant 0 : index
    %3 = vector.load %arg2[%c0_2, %c0_3] : memref<32x32xbf16, #tpu.memory_space<vmem>>, vector<32x32xbf16>
    %cst = arith.constant dense<0.000000e+00> : vector<16x32xf32>
    %4 = tpu.matmul %2, %3, %cst {dimension_numbers = #tpu.dot_dimension_numbers<[1], [0], [0], [1], [0, 0, 1, 1], [], []>} : vector<16x32xbf16>, vector<32x32xbf16>, vector<16x32xf32> -> vector<16x32xf32>
    %cst_4 = arith.constant 0.353553385 : f32
    %5 = vector.broadcast %cst_4 : f32 to vector<16x32xf32>
    %6 = arith.mulf %4, %5 : vector<16x32xf32>
    %c0_5 = arith.constant 0 : index
    %c0_6 = arith.constant 0 : index
    %7 = vector.load %arg3[%c0_5, %c0_6] : memref<32x32xbf16, #tpu.memory_space<vmem>>, vector<32x32xbf16>
    %cst_7 = arith.constant dense<0.000000e+00> : vector<16x32xf32>
    %8 = tpu.matmul %2, %7, %cst_7 {dimension_numbers = #tpu.dot_dimension_numbers<[1], [0], [0], [1], [0, 0, 1, 1], [], []>} : vector<16x32xbf16>, vector<32x32xbf16>, vector<16x32xf32> -> vector<16x32xf32>
    %c0_8 = arith.constant 0 : index
    %c0_9 = arith.constant 0 : index
    %9 = vector.load %arg4[%c0_8, %c0_9] : memref<32x32xbf16, #tpu.memory_space<vmem>>, vector<32x32xbf16>
    %cst_10 = arith.constant dense<0.000000e+00> : vector<16x32xf32>
    %10 = tpu.matmul %2, %9, %cst_10 {dimension_numbers = #tpu.dot_dimension_numbers<[1], [0], [0], [1], [0, 0, 1, 1], [], []>} : vector<16x32xbf16>, vector<32x32xbf16>, vector<16x32xf32> -> vector<16x32xf32>
    %11 = arith.truncf %6 : vector<16x32xf32> to vector<16x32xbf16>
    %12 = vector.shape_cast %11 : vector<16x32xbf16> to vector<2x8x32xbf16>
    %13 = arith.truncf %8 : vector<16x32xf32> to vector<16x32xbf16>
    %14 = vector.shape_cast %13 : vector<16x32xbf16> to vector<2x8x32xbf16>
    %15 = arith.truncf %10 : vector<16x32xf32> to vector<16x32xbf16>
    %16 = vector.shape_cast %15 : vector<16x32xbf16> to vector<2x8x32xbf16>
    %17 = tpu.iota {dimensions = array<i32: 0>} : vector<8x8xi32>
    %18 = tpu.iota {dimensions = array<i32: 1>} : vector<8x8xi32>
    %19 = arith.cmpi sge, %17, %18 : vector<8x8xi32>
    %20 = vector.shape_cast %19 : vector<8x8xi1> to vector<1x8x8xi1>
    %cst_11 = arith.constant 0.000000e+00 : f32
    %21 = vector.broadcast %cst_11 : f32 to vector<16x32xf32>
    %22 = vector.extract_strided_slice %12 {offsets = [0, 0, 0], sizes = [2, 8, 8], strides = [1, 1, 1]} : vector<2x8x32xbf16> to vector<2x8x8xbf16>
    %23 = vector.extract_strided_slice %14 {offsets = [0, 0, 0], sizes = [2, 8, 8], strides = [1, 1, 1]} : vector<2x8x32xbf16> to vector<2x8x8xbf16>
    %24 = vector.extract_strided_slice %16 {offsets = [0, 0, 0], sizes = [2, 8, 8], strides = [1, 1, 1]} : vector<2x8x32xbf16> to vector<2x8x8xbf16>
    "tpu.trace_start"() <{level = 10 : i32, message = "bqd,bkd->bqk"}> : () -> ()
    %cst_12 = arith.constant dense<0.000000e+00> : vector<2x8x8xf32>
    %25 = tpu.matmul %22, %23, %cst_12 {dimension_numbers = #tpu.dot_dimension_numbers<[2], [2], [1], [1], [0, 0, 0, 1, 1, 1], [0], [0]>} : vector<2x8x8xbf16>, vector<2x8x8xbf16>, vector<2x8x8xf32> -> vector<2x8x8xf32>
    %cst_13 = arith.constant -1.000000e+30 : f32
    "tpu.trace_stop"() : () -> ()
    %26 = vector.shape_cast %20 : vector<1x8x8xi1> to vector<1x8x8xi1>
    %27 = vector.broadcast %26 : vector<1x8x8xi1> to vector<2x8x8xi1>
    %28 = vector.broadcast %cst_13 : f32 to vector<2x8x8xf32>
    %29 = arith.select %27, %25, %28 : vector<2x8x8xi1>, vector<2x8x8xf32>
    %cst_14 = arith.constant dense<0xFF800000> : vector<2x8xf32>
    %30 = vector.multi_reduction <maximumf>, %29, %cst_14 [2] : vector<2x8x8xf32> to vector<2x8xf32>
    %31 = vector.shape_cast %30 : vector<2x8xf32> to vector<2x8x1xf32>
    %32 = vector.broadcast %31 : vector<2x8x1xf32> to vector<2x8x8xf32>
    %33 = arith.subf %29, %32 : vector<2x8x8xf32>
    %34 = math.exp %33 : vector<2x8x8xf32>
    %cst_15 = arith.constant dense<0.000000e+00> : vector<2x8xf32>
    %35 = vector.multi_reduction <add>, %34, %cst_15 [2] : vector<2x8x8xf32> to vector<2x8xf32>
    %36 = vector.shape_cast %35 : vector<2x8xf32> to vector<2x8x1xf32>
    %37 = arith.truncf %34 : vector<2x8x8xf32> to vector<2x8x8xbf16>
    "tpu.trace_start"() <{level = 10 : i32, message = "bqk,bkd->bqd"}> : () -> ()
    %cst_16 = arith.constant dense<0.000000e+00> : vector<2x8x8xf32>
    %38 = tpu.matmul %37, %24, %cst_16 {dimension_numbers = #tpu.dot_dimension_numbers<[2], [1], [1], [2], [0, 0, 0, 1, 1, 2], [0], [0]>} : vector<2x8x8xbf16>, vector<2x8x8xbf16>, vector<2x8x8xf32> -> vector<2x8x8xf32>
    "tpu.trace_stop"() : () -> ()
    %39 = tpu.reciprocal %36 {approx = true} : vector<2x8x1xf32> -> vector<2x8x1xf32>
    %40 = vector.broadcast %39 : vector<2x8x1xf32> to vector<2x8x8xf32>
    %41 = arith.mulf %38, %40 : vector<2x8x8xf32>
    %42 = vector.shape_cast %41 : vector<2x8x8xf32> to vector<16x8xf32>
    %43 = arith.truncf %42 : vector<16x8xf32> to vector<16x8xbf16>
    %c0_17 = arith.constant 0 : index
    %c0_18 = arith.constant 0 : index
    %44 = vector.load %arg5[%c0_17, %c0_18] : memref<32x32xbf16, #tpu.memory_space<vmem>>, vector<8x32xbf16>
    %cst_19 = arith.constant dense<0.000000e+00> : vector<16x32xf32>
    %45 = tpu.matmul %43, %44, %cst_19 {dimension_numbers = #tpu.dot_dimension_numbers<[1], [0], [0], [1], [0, 0, 1, 1], [], []>} : vector<16x8xbf16>, vector<8x32xbf16>, vector<16x32xf32> -> vector<16x32xf32>
    %46 = arith.addf %21, %45 : vector<16x32xf32>
    %47 = vector.extract_strided_slice %12 {offsets = [0, 0, 8], sizes = [2, 8, 8], strides = [1, 1, 1]} : vector<2x8x32xbf16> to vector<2x8x8xbf16>
    %48 = vector.extract_strided_slice %14 {offsets = [0, 0, 8], sizes = [2, 8, 8], strides = [1, 1, 1]} : vector<2x8x32xbf16> to vector<2x8x8xbf16>
    %49 = vector.extract_strided_slice %16 {offsets = [0, 0, 8], sizes = [2, 8, 8], strides = [1, 1, 1]} : vector<2x8x32xbf16> to vector<2x8x8xbf16>
    "tpu.trace_start"() <{level = 10 : i32, message = "bqd,bkd->bqk"}> : () -> ()
    %cst_20 = arith.constant dense<0.000000e+00> : vector<2x8x8xf32>
    %50 = tpu.matmul %47, %48, %cst_20 {dimension_numbers = #tpu.dot_dimension_numbers<[2], [2], [1], [1], [0, 0, 0, 1, 1, 1], [0], [0]>} : vector<2x8x8xbf16>, vector<2x8x8xbf16>, vector<2x8x8xf32> -> vector<2x8x8xf32>
    %cst_21 = arith.constant -1.000000e+30 : f32
    "tpu.trace_stop"() : () -> ()
    %51 = vector.shape_cast %20 : vector<1x8x8xi1> to vector<1x8x8xi1>
    %52 = vector.broadcast %51 : vector<1x8x8xi1> to vector<2x8x8xi1>
    %53 = vector.broadcast %cst_21 : f32 to vector<2x8x8xf32>
    %54 = arith.select %52, %50, %53 : vector<2x8x8xi1>, vector<2x8x8xf32>
    %cst_22 = arith.constant dense<0xFF800000> : vector<2x8xf32>
    %55 = vector.multi_reduction <maximumf>, %54, %cst_22 [2] : vector<2x8x8xf32> to vector<2x8xf32>
    %56 = vector.shape_cast %55 : vector<2x8xf32> to vector<2x8x1xf32>
    %57 = vector.broadcast %56 : vector<2x8x1xf32> to vector<2x8x8xf32>
    %58 = arith.subf %54, %57 : vector<2x8x8xf32>
    %59 = math.exp %58 : vector<2x8x8xf32>
    %cst_23 = arith.constant dense<0.000000e+00> : vector<2x8xf32>
    %60 = vector.multi_reduction <add>, %59, %cst_23 [2] : vector<2x8x8xf32> to vector<2x8xf32>
    %61 = vector.shape_cast %60 : vector<2x8xf32> to vector<2x8x1xf32>
    %62 = arith.truncf %59 : vector<2x8x8xf32> to vector<2x8x8xbf16>
    "tpu.trace_start"() <{level = 10 : i32, message = "bqk,bkd->bqd"}> : () -> ()
    %cst_24 = arith.constant dense<0.000000e+00> : vector<2x8x8xf32>
    %63 = tpu.matmul %62, %49, %cst_24 {dimension_numbers = #tpu.dot_dimension_numbers<[2], [1], [1], [2], [0, 0, 0, 1, 1, 2], [0], [0]>} : vector<2x8x8xbf16>, vector<2x8x8xbf16>, vector<2x8x8xf32> -> vector<2x8x8xf32>
    "tpu.trace_stop"() : () -> ()
    %64 = tpu.reciprocal %61 {approx = true} : vector<2x8x1xf32> -> vector<2x8x1xf32>
    %65 = vector.broadcast %64 : vector<2x8x1xf32> to vector<2x8x8xf32>
    %66 = arith.mulf %63, %65 : vector<2x8x8xf32>
    %67 = vector.shape_cast %66 : vector<2x8x8xf32> to vector<16x8xf32>
    %68 = arith.truncf %67 : vector<16x8xf32> to vector<16x8xbf16>
    %c8 = arith.constant 8 : index
    %c0_25 = arith.constant 0 : index
    %69 = vector.load %arg5[%c8, %c0_25] : memref<32x32xbf16, #tpu.memory_space<vmem>>, vector<8x32xbf16>
    %cst_26 = arith.constant dense<0.000000e+00> : vector<16x32xf32>
    %70 = tpu.matmul %68, %69, %cst_26 {dimension_numbers = #tpu.dot_dimension_numbers<[1], [0], [0], [1], [0, 0, 1, 1], [], []>} : vector<16x8xbf16>, vector<8x32xbf16>, vector<16x32xf32> -> vector<16x32xf32>
    %71 = arith.addf %46, %70 : vector<16x32xf32>
    %72 = vector.extract_strided_slice %12 {offsets = [0, 0, 16], sizes = [2, 8, 8], strides = [1, 1, 1]} : vector<2x8x32xbf16> to vector<2x8x8xbf16>
    %73 = vector.extract_strided_slice %14 {offsets = [0, 0, 16], sizes = [2, 8, 8], strides = [1, 1, 1]} : vector<2x8x32xbf16> to vector<2x8x8xbf16>
    %74 = vector.extract_strided_slice %16 {offsets = [0, 0, 16], sizes = [2, 8, 8], strides = [1, 1, 1]} : vector<2x8x32xbf16> to vector<2x8x8xbf16>
    "tpu.trace_start"() <{level = 10 : i32, message = "bqd,bkd->bqk"}> : () -> ()
    %cst_27 = arith.constant dense<0.000000e+00> : vector<2x8x8xf32>
    %75 = tpu.matmul %72, %73, %cst_27 {dimension_numbers = #tpu.dot_dimension_numbers<[2], [2], [1], [1], [0, 0, 0, 1, 1, 1], [0], [0]>} : vector<2x8x8xbf16>, vector<2x8x8xbf16>, vector<2x8x8xf32> -> vector<2x8x8xf32>
    %cst_28 = arith.constant -1.000000e+30 : f32
    "tpu.trace_stop"() : () -> ()
    %76 = vector.shape_cast %20 : vector<1x8x8xi1> to vector<1x8x8xi1>
    %77 = vector.broadcast %76 : vector<1x8x8xi1> to vector<2x8x8xi1>
    %78 = vector.broadcast %cst_28 : f32 to vector<2x8x8xf32>
    %79 = arith.select %77, %75, %78 : vector<2x8x8xi1>, vector<2x8x8xf32>
    %cst_29 = arith.constant dense<0xFF800000> : vector<2x8xf32>
    %80 = vector.multi_reduction <maximumf>, %79, %cst_29 [2] : vector<2x8x8xf32> to vector<2x8xf32>
    %81 = vector.shape_cast %80 : vector<2x8xf32> to vector<2x8x1xf32>
    %82 = vector.broadcast %81 : vector<2x8x1xf32> to vector<2x8x8xf32>
    %83 = arith.subf %79, %82 : vector<2x8x8xf32>
    %84 = math.exp %83 : vector<2x8x8xf32>
    %cst_30 = arith.constant dense<0.000000e+00> : vector<2x8xf32>
    %85 = vector.multi_reduction <add>, %84, %cst_30 [2] : vector<2x8x8xf32> to vector<2x8xf32>
    %86 = vector.shape_cast %85 : vector<2x8xf32> to vector<2x8x1xf32>
    %87 = arith.truncf %84 : vector<2x8x8xf32> to vector<2x8x8xbf16>
    "tpu.trace_start"() <{level = 10 : i32, message = "bqk,bkd->bqd"}> : () -> ()
    %cst_31 = arith.constant dense<0.000000e+00> : vector<2x8x8xf32>
    %88 = tpu.matmul %87, %74, %cst_31 {dimension_numbers = #tpu.dot_dimension_numbers<[2], [1], [1], [2], [0, 0, 0, 1, 1, 2], [0], [0]>} : vector<2x8x8xbf16>, vector<2x8x8xbf16>, vector<2x8x8xf32> -> vector<2x8x8xf32>
    "tpu.trace_stop"() : () -> ()
    %89 = tpu.reciprocal %86 {approx = true} : vector<2x8x1xf32> -> vector<2x8x1xf32>
    %90 = vector.broadcast %89 : vector<2x8x1xf32> to vector<2x8x8xf32>
    %91 = arith.mulf %88, %90 : vector<2x8x8xf32>
    %92 = vector.shape_cast %91 : vector<2x8x8xf32> to vector<16x8xf32>
    %93 = arith.truncf %92 : vector<16x8xf32> to vector<16x8xbf16>
    %c16 = arith.constant 16 : index
    %c0_32 = arith.constant 0 : index
    %94 = vector.load %arg5[%c16, %c0_32] : memref<32x32xbf16, #tpu.memory_space<vmem>>, vector<8x32xbf16>
    %cst_33 = arith.constant dense<0.000000e+00> : vector<16x32xf32>
    %95 = tpu.matmul %93, %94, %cst_33 {dimension_numbers = #tpu.dot_dimension_numbers<[1], [0], [0], [1], [0, 0, 1, 1], [], []>} : vector<16x8xbf16>, vector<8x32xbf16>, vector<16x32xf32> -> vector<16x32xf32>
    %96 = arith.addf %71, %95 : vector<16x32xf32>
    %97 = vector.extract_strided_slice %12 {offsets = [0, 0, 24], sizes = [2, 8, 8], strides = [1, 1, 1]} : vector<2x8x32xbf16> to vector<2x8x8xbf16>
    %98 = vector.extract_strided_slice %14 {offsets = [0, 0, 24], sizes = [2, 8, 8], strides = [1, 1, 1]} : vector<2x8x32xbf16> to vector<2x8x8xbf16>
    %99 = vector.extract_strided_slice %16 {offsets = [0, 0, 24], sizes = [2, 8, 8], strides = [1, 1, 1]} : vector<2x8x32xbf16> to vector<2x8x8xbf16>
    "tpu.trace_start"() <{level = 10 : i32, message = "bqd,bkd->bqk"}> : () -> ()
    %cst_34 = arith.constant dense<0.000000e+00> : vector<2x8x8xf32>
    %100 = tpu.matmul %97, %98, %cst_34 {dimension_numbers = #tpu.dot_dimension_numbers<[2], [2], [1], [1], [0, 0, 0, 1, 1, 1], [0], [0]>} : vector<2x8x8xbf16>, vector<2x8x8xbf16>, vector<2x8x8xf32> -> vector<2x8x8xf32>
    %cst_35 = arith.constant -1.000000e+30 : f32
    "tpu.trace_stop"() : () -> ()
    %101 = vector.shape_cast %20 : vector<1x8x8xi1> to vector<1x8x8xi1>
    %102 = vector.broadcast %101 : vector<1x8x8xi1> to vector<2x8x8xi1>
    %103 = vector.broadcast %cst_35 : f32 to vector<2x8x8xf32>
    %104 = arith.select %102, %100, %103 : vector<2x8x8xi1>, vector<2x8x8xf32>
    %cst_36 = arith.constant dense<0xFF800000> : vector<2x8xf32>
    %105 = vector.multi_reduction <maximumf>, %104, %cst_36 [2] : vector<2x8x8xf32> to vector<2x8xf32>
    %106 = vector.shape_cast %105 : vector<2x8xf32> to vector<2x8x1xf32>
    %107 = vector.broadcast %106 : vector<2x8x1xf32> to vector<2x8x8xf32>
    %108 = arith.subf %104, %107 : vector<2x8x8xf32>
    %109 = math.exp %108 : vector<2x8x8xf32>
    %cst_37 = arith.constant dense<0.000000e+00> : vector<2x8xf32>
    %110 = vector.multi_reduction <add>, %109, %cst_37 [2] : vector<2x8x8xf32> to vector<2x8xf32>
    %111 = vector.shape_cast %110 : vector<2x8xf32> to vector<2x8x1xf32>
    %112 = arith.truncf %109 : vector<2x8x8xf32> to vector<2x8x8xbf16>
    "tpu.trace_start"() <{level = 10 : i32, message = "bqk,bkd->bqd"}> : () -> ()
    %cst_38 = arith.constant dense<0.000000e+00> : vector<2x8x8xf32>
    %113 = tpu.matmul %112, %99, %cst_38 {dimension_numbers = #tpu.dot_dimension_numbers<[2], [1], [1], [2], [0, 0, 0, 1, 1, 2], [0], [0]>} : vector<2x8x8xbf16>, vector<2x8x8xbf16>, vector<2x8x8xf32> -> vector<2x8x8xf32>
    "tpu.trace_stop"() : () -> ()
    %114 = tpu.reciprocal %111 {approx = true} : vector<2x8x1xf32> -> vector<2x8x1xf32>
    %115 = vector.broadcast %114 : vector<2x8x1xf32> to vector<2x8x8xf32>
    %116 = arith.mulf %113, %115 : vector<2x8x8xf32>
    %117 = vector.shape_cast %116 : vector<2x8x8xf32> to vector<16x8xf32>
    %118 = arith.truncf %117 : vector<16x8xf32> to vector<16x8xbf16>
    %c24 = arith.constant 24 : index
    %c0_39 = arith.constant 0 : index
    %119 = vector.load %arg5[%c24, %c0_39] : memref<32x32xbf16, #tpu.memory_space<vmem>>, vector<8x32xbf16>
    %cst_40 = arith.constant dense<0.000000e+00> : vector<16x32xf32>
    %120 = tpu.matmul %118, %119, %cst_40 {dimension_numbers = #tpu.dot_dimension_numbers<[1], [0], [0], [1], [0, 0, 1, 1], [], []>} : vector<16x8xbf16>, vector<8x32xbf16>, vector<16x32xf32> -> vector<16x32xf32>
    %121 = arith.addf %96, %120 : vector<16x32xf32>
    %c0_41 = arith.constant 0 : index
    %c0_42 = arith.constant 0 : index
    %122 = vector.load %arg7[%c0_41, %c0_42] : memref<1x32xf32, #tpu.memory_space<vmem>>, vector<1x32xf32>
    %c0_43 = arith.constant 0 : index
    %c0_44 = arith.constant 0 : index
    %123 = vector.load %arg8[%c0_43, %c0_44] : memref<1x32xf32, #tpu.memory_space<vmem>>, vector<1x32xf32>
    %124 = arith.addf %1, %121 : vector<16x32xf32>
    %c0_45 = arith.constant 0 : index
    %c0_46 = arith.constant 0 : index
    %125 = vector.load %arg6[%c0_45, %c0_46] : memref<1x32xf32, #tpu.memory_space<vmem>>, vector<1x32xf32>
    %126 = vector.broadcast %125 : vector<1x32xf32> to vector<16x32xf32>
    %127 = arith.addf %124, %126 : vector<16x32xf32>
    %cst_47 = arith.constant dense<0.000000e+00> : vector<16xf32>
    %128 = vector.multi_reduction <add>, %127, %cst_47 [1] : vector<16x32xf32> to vector<16xf32>
    %129 = vector.shape_cast %128 : vector<16xf32> to vector<16x1xf32>
    %cst_48 = arith.constant 3.200000e+01 : f32
    %130 = vector.broadcast %cst_48 : f32 to vector<16x1xf32>
    %131 = arith.divf %129, %130 : vector<16x1xf32>
    %132 = vector.broadcast %131 : vector<16x1xf32> to vector<16x32xf32>
    %133 = arith.subf %127, %132 : vector<16x32xf32>
    %134 = arith.mulf %133, %133 : vector<16x32xf32>
    %cst_49 = arith.constant dense<0.000000e+00> : vector<16xf32>
    %135 = vector.multi_reduction <add>, %134, %cst_49 [1] : vector<16x32xf32> to vector<16xf32>
    %136 = vector.shape_cast %135 : vector<16xf32> to vector<16x1xf32>
    %cst_50 = arith.constant 3.200000e+01 : f32
    %137 = vector.broadcast %cst_50 : f32 to vector<16x1xf32>
    %138 = arith.divf %136, %137 : vector<16x1xf32>
    %139 = vector.broadcast %131 : vector<16x1xf32> to vector<16x32xf32>
    %140 = arith.subf %127, %139 : vector<16x32xf32>
    %cst_51 = arith.constant 9.99999974E-6 : f32
    %141 = vector.broadcast %cst_51 : f32 to vector<16x1xf32>
    %142 = arith.addf %138, %141 : vector<16x1xf32>
    %143 = math.rsqrt %142 : vector<16x1xf32>
    %144 = vector.broadcast %143 : vector<16x1xf32> to vector<16x32xf32>
    %145 = arith.mulf %140, %144 : vector<16x32xf32>
    %146 = vector.broadcast %122 : vector<1x32xf32> to vector<16x32xf32>
    %147 = arith.mulf %145, %146 : vector<16x32xf32>
    %148 = vector.broadcast %123 : vector<1x32xf32> to vector<16x32xf32>
    %149 = arith.addf %147, %148 : vector<16x32xf32>
    %150 = arith.truncf %149 : vector<16x32xf32> to vector<16x32xbf16>
    %c0_52 = arith.constant 0 : index
    %c0_53 = arith.constant 0 : index
    %151 = vector.load %arg9[%c0_52, %c0_53] : memref<32x128xbf16, #tpu.memory_space<vmem>>, vector<32x128xbf16>
    %cst_54 = arith.constant dense<0.000000e+00> : vector<16x128xf32>
    %152 = tpu.matmul %150, %151, %cst_54 {dimension_numbers = #tpu.dot_dimension_numbers<[1], [0], [0], [1], [0, 0, 1, 1], [], []>} : vector<16x32xbf16>, vector<32x128xbf16>, vector<16x128xf32> -> vector<16x128xf32>
    %c0_55 = arith.constant 0 : index
    %c0_56 = arith.constant 0 : index
    %153 = vector.load %arg10[%c0_55, %c0_56] : memref<1x128xf32, #tpu.memory_space<vmem>>, vector<1x128xf32>
    %154 = vector.broadcast %153 : vector<1x128xf32> to vector<16x128xf32>
    %155 = arith.addf %152, %154 : vector<16x128xf32>
    %cst_57 = arith.constant 0.000000e+00 : f32
    %156 = vector.broadcast %cst_57 : f32 to vector<16x128xf32>
    %157 = arith.maximumf %155, %156 : vector<16x128xf32>
    %158 = arith.truncf %157 : vector<16x128xf32> to vector<16x128xbf16>
    %c0_58 = arith.constant 0 : index
    %c0_59 = arith.constant 0 : index
    %159 = vector.load %arg11[%c0_58, %c0_59] : memref<128x32xbf16, #tpu.memory_space<vmem>>, vector<128x32xbf16>
    %cst_60 = arith.constant dense<0.000000e+00> : vector<16x32xf32>
    %160 = tpu.matmul %158, %159, %cst_60 {dimension_numbers = #tpu.dot_dimension_numbers<[1], [0], [0], [1], [0, 0, 1, 1], [], []>} : vector<16x128xbf16>, vector<128x32xbf16>, vector<16x32xf32> -> vector<16x32xf32>
    %161 = arith.addf %149, %160 : vector<16x32xf32>
    %c0_61 = arith.constant 0 : index
    %c0_62 = arith.constant 0 : index
    %162 = vector.load %arg12[%c0_61, %c0_62] : memref<1x32xf32, #tpu.memory_space<vmem>>, vector<1x32xf32>
    %163 = vector.broadcast %162 : vector<1x32xf32> to vector<16x32xf32>
    %164 = arith.addf %161, %163 : vector<16x32xf32>
    %cst_63 = arith.constant dense<0.000000e+00> : vector<16xf32>
    %165 = vector.multi_reduction <add>, %164, %cst_63 [1] : vector<16x32xf32> to vector<16xf32>
    %166 = vector.shape_cast %165 : vector<16xf32> to vector<16x1xf32>
    %cst_64 = arith.constant 3.200000e+01 : f32
    %167 = vector.broadcast %cst_64 : f32 to vector<16x1xf32>
    %168 = arith.divf %166, %167 : vector<16x1xf32>
    %169 = vector.broadcast %168 : vector<16x1xf32> to vector<16x32xf32>
    %170 = arith.subf %164, %169 : vector<16x32xf32>
    %171 = arith.mulf %170, %170 : vector<16x32xf32>
    %cst_65 = arith.constant dense<0.000000e+00> : vector<16xf32>
    %172 = vector.multi_reduction <add>, %171, %cst_65 [1] : vector<16x32xf32> to vector<16xf32>
    %173 = vector.shape_cast %172 : vector<16xf32> to vector<16x1xf32>
    %cst_66 = arith.constant 3.200000e+01 : f32
    %174 = vector.broadcast %cst_66 : f32 to vector<16x1xf32>
    %175 = arith.divf %173, %174 : vector<16x1xf32>
    %176 = vector.broadcast %168 : vector<16x1xf32> to vector<16x32xf32>
    %177 = arith.subf %164, %176 : vector<16x32xf32>
    %cst_67 = arith.constant 9.99999974E-6 : f32
    %178 = vector.broadcast %cst_67 : f32 to vector<16x1xf32>
    %179 = arith.addf %175, %178 : vector<16x1xf32>
    %180 = math.rsqrt %179 : vector<16x1xf32>
    %181 = vector.broadcast %180 : vector<16x1xf32> to vector<16x32xf32>
    %182 = arith.mulf %177, %181 : vector<16x32xf32>
    %183 = vector.broadcast %122 : vector<1x32xf32> to vector<16x32xf32>
    %184 = arith.mulf %182, %183 : vector<16x32xf32>
    %185 = vector.broadcast %123 : vector<1x32xf32> to vector<16x32xf32>
    %186 = arith.addf %184, %185 : vector<16x32xf32>
    %187 = vector.shape_cast %186 : vector<16x32xf32> to vector<2x8x32xf32>
    %c0_68 = arith.constant 0 : index
    %c0_69 = arith.constant 0 : index
    %c0_70 = arith.constant 0 : index
    %188 = vector.load %arg13[%c0_68, %c0_69, %c0_70] : memref<2x8x32xf32, #tpu.memory_space<vmem>>, vector<2x8x32xf32>
    tpu.vector_store %arg13[%c0_68, %c0_69, %c0_70], %187 {strides = array<i32>} : memref<2x8x32xf32, #tpu.memory_space<vmem>>, vector<2x8x32xf32>,
    return
  }
  func.func @transform_0(%arg0: i32) -> (i32, i32, i32) {
    %c0_i32 = arith.constant 0 : i32
    %c0_i32_0 = arith.constant 0 : i32
    %c0_i32_1 = arith.constant 0 : i32
    return %arg0, %c0_i32, %c0_i32_0 : i32, i32, i32
  }
  func.func @transform_1(%arg0: i32) -> (i32, i32) {
    %c0_i32 = arith.constant 0 : i32
    %c0_i32_0 = arith.constant 0 : i32
    %c0_i32_1 = arith.constant 0 : i32
    return %c0_i32, %c0_i32_0 : i32, i32
  }
  func.func @transform_2(%arg0: i32) -> (i32, i32) {
    %c0_i32 = arith.constant 0 : i32
    %c0_i32_0 = arith.constant 0 : i32
    %c0_i32_1 = arith.constant 0 : i32
    return %c0_i32, %c0_i32_0 : i32, i32
  }
  func.func @transform_3(%arg0: i32) -> (i32, i32) {
    %c0_i32 = arith.constant 0 : i32
    %c0_i32_0 = arith.constant 0 : i32
    %c0_i32_1 = arith.constant 0 : i32
    return %c0_i32, %c0_i32_0 : i32, i32
  }
  func.func @transform_4(%arg0: i32) -> (i32, i32) {
    %c0_i32 = arith.constant 0 : i32
    %c0_i32_0 = arith.constant 0 : i32
    %c0_i32_1 = arith.constant 0 : i32
    return %c0_i32, %c0_i32_0 : i32, i32
  }
  func.func @transform_5(%arg0: i32) -> (i32, i32) {
    %c0_i32 = arith.constant 0 : i32
    %c0_i32_0 = arith.constant 0 : i32
    %c0_i32_1 = arith.constant 0 : i32
    return %c0_i32, %c0_i32_0 : i32, i32
  }
  func.func @transform_6(%arg0: i32) -> (i32, i32) {
    %c0_i32 = arith.constant 0 : i32
    %c0_i32_0 = arith.constant 0 : i32
    %c0_i32_1 = arith.constant 0 : i32
    return %c0_i32, %c0_i32_0 : i32, i32
  }
  func.func @transform_7(%arg0: i32) -> (i32, i32) {
    %c0_i32 = arith.constant 0 : i32
    %c0_i32_0 = arith.constant 0 : i32
    %c0_i32_1 = arith.constant 0 : i32
    return %c0_i32, %c0_i32_0 : i32, i32
  }
  func.func @transform_8(%arg0: i32) -> (i32, i32) {
    %c0_i32 = arith.constant 0 : i32
    %c0_i32_0 = arith.constant 0 : i32
    %c0_i32_1 = arith.constant 0 : i32
    return %c0_i32, %c0_i32_0 : i32, i32
  }
  func.func @transform_9(%arg0: i32) -> (i32, i32) {
    %c0_i32 = arith.constant 0 : i32
    %c0_i32_0 = arith.constant 0 : i32
    %c0_i32_1 = arith.constant 0 : i32
    return %c0_i32, %c0_i32_0 : i32, i32
  }
  func.func @transform_10(%arg0: i32) -> (i32, i32) {
    %c0_i32 = arith.constant 0 : i32
    %c0_i32_0 = arith.constant 0 : i32
    %c0_i32_1 = arith.constant 0 : i32
    return %c0_i32, %c0_i32_0 : i32, i32
  }
  func.func @transform_11(%arg0: i32) -> (i32, i32) {
    %c0_i32 = arith.constant 0 : i32
    %c0_i32_0 = arith.constant 0 : i32
    %c0_i32_1 = arith.constant 0 : i32
    return %c0_i32, %c0_i32_0 : i32, i32
  }
  func.func @transform_12(%arg0: i32) -> (i32, i32, i32) {
    %c0_i32 = arith.constant 0 : i32
    %c0_i32_0 = arith.constant 0 : i32
    %c0_i32_1 = arith.constant 0 : i32
    return %arg0, %c0_i32, %c0_i32_0 : i32, i32, i32
  }
}

</mosaic_0001>

<llo_original>
// kernel: tpu_custom_call.1
$region0: #{tpu_custom_call.1}
  #allocation0 [shape = 'u32[]', space=smem, size = 0x4, offset = 0x4, fixed_abs, tag = 'smem constant byte address 0x4 - core index']
  #allocation1 [shape = 'u32[144,128]{1,0:T(1,128)}', space=vmem, size = 0x12000, scoped, tag = 'internal scratch']
  %s0 = inlined_call_operand.vmem [shape: f32[2,8,32], index: 0, kind: input, shape index: {}]
  %s1 = inlined_call_operand.vmem [shape: bf16[32,32], index: 1, kind: input, shape index: {}]
  %s2 = inlined_call_operand.vmem [shape: bf16[32,32], index: 2, kind: input, shape index: {}]
  %s3 = inlined_call_operand.vmem [shape: bf16[32,32], index: 3, kind: input, shape index: {}]
  %s4 = inlined_call_operand.vmem [shape: bf16[32,32], index: 4, kind: input, shape index: {}]
  %s5 = inlined_call_operand.vmem [shape: f32[1,32], index: 5, kind: input, shape index: {}]
  %s6 = inlined_call_operand.vmem [shape: f32[1,32], index: 6, kind: input, shape index: {}]
  %s7 = inlined_call_operand.vmem [shape: f32[1,32], index: 7, kind: input, shape index: {}]
  %s8 = inlined_call_operand.hbm [shape: bf16[32,128], index: 8, kind: input, shape index: {}]
  %s9 = inlined_call_operand.vmem [shape: f32[1,128], index: 9, kind: input, shape index: {}]
  %s10 = inlined_call_operand.vmem [shape: bf16[128,32], index: 10, kind: input, shape index: {}]
  %s11 = inlined_call_operand.vmem [shape: f32[1,32], index: 11, kind: input, shape index: {}]
  %s12 = inlined_call_operand.hbm [shape: f32[2,8,32], index: 12, kind: output, shape index: {}]
  %s13 = sld [smem:[#allocation0]]
  $region62: #{tpu_custom_call.1} parent=0
    _
  %s15 = ssub.s32 1, %s13
  %s16 = scalar_select 0, %s15, %s13
  $region1: #{tpu_custom_call.1} parent=0
    #allocation2 [shape = 'u8[8192]{0}', space=vmem, size = 0x2000, scoped, tag = 'input window, operand 8, single buffered']
    #allocation3 [shape = 's32[1]{0}', space=sflag, size = 0x4, scoped, tag = 'scoped memory for tpu_custom_call.1']
    #allocation4 [shape = 's32[1]{0}', space=sflag, size = 0x4, scoped, tag = 'scoped memory for tpu_custom_call.1']
    #allocation5 [shape = 'u8[8192]{0}', space=vmem, size = 0x2000, scoped, tag = 'output window, operand 0, single buffered']
    %17 = vsyncpa [#allocation3], 0
    %18 = vsyncpa [#allocation4], 0
    // Predicated region
    $region2: #{tpu_custom_call.1} parent=1 // pred_check
      _
    $region3: #{tpu_custom_call.1} parent=1 // pred_check_branch
      %20 = sbr.rel (0) target = $region5
    $region4: #{tpu_custom_call.1} parent=1 // pred_region
      _
    $region5: #{tpu_custom_call.1} parent=1 // pred_fallthru
      _
    // Predicated region
    $region6: #{tpu_custom_call.1} parent=1 // pred_check
      _
    $region7: #{tpu_custom_call.1} parent=1 // pred_check_branch
      %22 = sbr.rel (0) target = $region9
    $region8: #{tpu_custom_call.1} parent=1 // pred_region
      _
    $region9: #{tpu_custom_call.1} parent=1 // pred_fallthru
      _
    // Predicated region
    $region10: #{tpu_custom_call.1} parent=1 // pred_check
      _
    $region11: #{tpu_custom_call.1} parent=1 // pred_check_branch
      %24 = sbr.rel (0) target = $region13
    $region12: #{tpu_custom_call.1} parent=1 // pred_region
      _
    $region13: #{tpu_custom_call.1} parent=1 // pred_fallthru
      _
    // Predicated region
    $region14: #{tpu_custom_call.1} parent=1 // pred_check
      _
    $region15: #{tpu_custom_call.1} parent=1 // pred_check_branch
      %26 = sbr.rel (0) target = $region17
    $region16: #{tpu_custom_call.1} parent=1 // pred_region
      _
    $region17: #{tpu_custom_call.1} parent=1 // pred_fallthru
      _
    // Predicated region
    $region18: #{tpu_custom_call.1} parent=1 // pred_check
      _
    $region19: #{tpu_custom_call.1} parent=1 // pred_check_branch
      %28 = sbr.rel (0) target = $region21
    $region20: #{tpu_custom_call.1} parent=1 // pred_region
      _
    $region21: #{tpu_custom_call.1} parent=1 // pred_fallthru
      _
    // Predicated region
    $region22: #{tpu_custom_call.1} parent=1 // pred_check
      _
    $region23: #{tpu_custom_call.1} parent=1 // pred_check_branch
      %30 = sbr.rel (0) target = $region25
    $region24: #{tpu_custom_call.1} parent=1 // pred_region
      _
    $region25: #{tpu_custom_call.1} parent=1 // pred_fallthru
      _
    // Predicated region
    $region26: #{tpu_custom_call.1} parent=1 // pred_check
      _
    $region27: #{tpu_custom_call.1} parent=1 // pred_check_branch
      %32 = sbr.rel (0) target = $region29
    $region28: #{tpu_custom_call.1} parent=1 // pred_region
      _
    $region29: #{tpu_custom_call.1} parent=1 // pred_fallthru
      _
    // Predicated region
    $region30: #{tpu_custom_call.1} parent=1 // pred_check
      _
    $region31: #{tpu_custom_call.1} parent=1 // pred_check_branch
      %34 = sbr.rel (0) target = $region33
    $region32: #{tpu_custom_call.1} parent=1 // pred_region
      _
    $region33: #{tpu_custom_call.1} parent=1 // pred_fallthru
      _
    // Predicated region
    $region34: #{tpu_custom_call.1} parent=1 // pred_check
      _
    $region35: #{tpu_custom_call.1} parent=1 // pred_check_branch
      %36 = sbr.rel (0) target = $region37
    $region36: #{tpu_custom_call.1} parent=1 // pred_region
      %s38 = ssub.s32 256, 256
      %39 = vsyncadd [#allocation3], %s38
      %s40 = sshll.u32 [#allocation2], 4
      %s41 = int_to_ptr.vmem [resolvable:$true] %s40
      %46 = dma.hbm_to_vmem [thread:$0]  %s8, 256, %s41, [#allocation3], 64, 64, 4
    $region37: #{tpu_custom_call.1} parent=1 // pred_fallthru
      _
    // Predicated region
    $region38: #{tpu_custom_call.1} parent=1 // pred_check
      _
    $region39: #{tpu_custom_call.1} parent=1 // pred_check_branch
      %48 = sbr.rel (0) target = $region41
    $region40: #{tpu_custom_call.1} parent=1 // pred_region
      _
    $region41: #{tpu_custom_call.1} parent=1 // pred_fallthru
      _
    // Predicated region
    $region42: #{tpu_custom_call.1} parent=1 // pred_check
      _
    $region43: #{tpu_custom_call.1} parent=1 // pred_check_branch
      %50 = sbr.rel (0) target = $region45
    $region44: #{tpu_custom_call.1} parent=1 // pred_region
      _
    $region45: #{tpu_custom_call.1} parent=1 // pred_fallthru
      _
    // Predicated region
    $region46: #{tpu_custom_call.1} parent=1 // pred_check
      _
    $region47: #{tpu_custom_call.1} parent=1 // pred_check_branch
      %52 = sbr.rel (0) target = $region49
    $region48: #{tpu_custom_call.1} parent=1 // pred_region
      _
    $region49: #{tpu_custom_call.1} parent=1 // pred_fallthru
      _
    // Predicated region
    $region50: #{tpu_custom_call.1} parent=1 // pred_check
      _
    $region51: #{tpu_custom_call.1} parent=1 // pred_check_branch
      %54 = sbr.rel (0) target = $region53
    $region52: #{tpu_custom_call.1} parent=1 // pred_region
      %55 = dma.done [#allocation3], 256
    $region53: #{tpu_custom_call.1} parent=1 // pred_fallthru
      _
    %v57 = vld [vmem:[%s0] sm:$0xff]
    %v58 = vld [vmem:[%s0 + $0x8] sm:$0xff]
    %v59 = vpack.c.bf16 %v58, %v57
    %v60 = vld [vmem:[%s1] sm:$0xf]
    %v61 = vld [vmem:[%s1 + $0x4] sm:$0xf]
    %v62 = vld [vmem:[%s1 + $0x8] sm:$0xf]
    %v63 = vld [vmem:[%s1 + $0xc] sm:$0xf]
    %v68 = vunpack.c.l.b16 %v60
    %v69 = vunpack.c.l.b16 %v61
    %v70 = vunpack.c.l.b16 %v62
    %v71 = vunpack.c.l.b16 %v63
    %v72 = vpack.c.b16 %v69, %v68
    %v73 = vpack.c.b16 %v71, %v70
    %vm76 = vcmask 261120
    %v78 = vsel %vm76, %v59, 0
    %80 = vmatprep.subr.bf16.mxu0 0
    %81 = vmatpush1.bf16.msra.mxu0 %v72
    %82 = vmatprep.subr.bf16.mxu0 0
    %83 = vmatpush1.bf16.msra.mxu0 %v73
    %84 = vmatprep.subr.bf16.mxu0 0
    %85 = vmatpush1.bf16.msra.mxu0 0
    %86 = vmatprep.subr.bf16.mxu0 0
    %87 = vmatpush1.bf16.msra.mxu0 0
    %88 = vmatprep.subr.bf16.mxu0 0
    %89 = vmatpush1.bf16.msra.mxu0 0
    %90 = vmatprep.subr.bf16.mxu0 0
    %91 = vmatpush1.bf16.msra.mxu0 0
    %92 = vmatprep.subr.bf16.mxu0 0
    %93 = vmatpush1.bf16.msra.mxu0 0
    %94 = vmatprep.subr.bf16.mxu0 0
    %95 = vmatpush1.bf16.msra.mxu0 0
    %96 = vmatprep.subr.bf16.mxu0 0
    %97 = vmatpush1.bf16.msra.mxu0 0
    %98 = vmatprep.subr.bf16.mxu0 0
    %99 = vmatpush1.bf16.msra.mxu0 0
    %100 = vmatprep.subr.bf16.mxu0 0
    %101 = vmatpush1.bf16.msra.mxu0 0
    %102 = vmatprep.subr.bf16.mxu0 0
    %103 = vmatpush1.bf16.msra.mxu0 0
    %104 = vmatprep.subr.bf16.mxu0 0
    %105 = vmatpush1.bf16.msra.mxu0 0
    %106 = vmatprep.subr.bf16.mxu0 0
    %107 = vmatpush1.bf16.msra.mxu0 0
    %108 = vmatprep.subr.bf16.mxu0 0
    %109 = vmatpush1.bf16.msra.mxu0 0
    %110 = vmatprep.subr.bf16.mxu0 0
    %111 = vmatpush1.bf16.msra.mxu0 0
    %112 = vmatprep.mubr.bf16.mxu0 0
    %113 = vmatmul.mubr.bf16.gmra.mrb[0].mxu0 %v78
    %v114 = vpop.f32.mrb[0].mxu0
    %v115 = vadd.f32 0.0, %v114
    %v116 = vpop.f32.mrb[0].mxu0
    %v117 = vpop.f32.mrb[0].mxu0
    %v118 = vadd.f32 0.0, %v117
    %v119 = vpop.f32.mrb[0].mxu0
    %120 = vdwg.mxu0
    %v121 = vmul.f32 %v115, 0.35355338
    %v122 = vmul.f32 %v118, 0.35355338
    %v123 = vld [vmem:[%s2] sm:$0xf]
    %v124 = vld [vmem:[%s2 + $0x4] sm:$0xf]
    %v125 = vld [vmem:[%s2 + $0x8] sm:$0xf]
    %v126 = vld [vmem:[%s2 + $0xc] sm:$0xf]
    %v131 = vunpack.c.l.b16 %v123
    %v132 = vunpack.c.l.b16 %v124
    %v133 = vunpack.c.l.b16 %v125
    %v134 = vunpack.c.l.b16 %v126
    %v135 = vpack.c.b16 %v132, %v131
    %v136 = vpack.c.b16 %v134, %v133
    %139 = vmatprep.subr.bf16.mxu0 0
    %140 = vmatpush1.bf16.msra.mxu0 %v135
    %141 = vmatprep.subr.bf16.mxu0 0
    %142 = vmatpush1.bf16.msra.mxu0 %v136
    %143 = vmatprep.subr.bf16.mxu0 0
    %144 = vmatpush1.bf16.msra.mxu0 0
    %145 = vmatprep.subr.bf16.mxu0 0
    %146 = vmatpush1.bf16.msra.mxu0 0
    %147 = vmatprep.subr.bf16.mxu0 0
    %148 = vmatpush1.bf16.msra.mxu0 0
    %149 = vmatprep.subr.bf16.mxu0 0
    %150 = vmatpush1.bf16.msra.mxu0 0
    %151 = vmatprep.subr.bf16.mxu0 0
    %152 = vmatpush1.bf16.msra.mxu0 0
    %153 = vmatprep.subr.bf16.mxu0 0
    %154 = vmatpush1.bf16.msra.mxu0 0
    %155 = vmatprep.subr.bf16.mxu0 0
    %156 = vmatpush1.bf16.msra.mxu0 0
    %157 = vmatprep.subr.bf16.mxu0 0
    %158 = vmatpush1.bf16.msra.mxu0 0
    %159 = vmatprep.subr.bf16.mxu0 0
    %160 = vmatpush1.bf16.msra.mxu0 0
    %161 = vmatprep.subr.bf16.mxu0 0
    %162 = vmatpush1.bf16.msra.mxu0 0
    %163 = vmatprep.subr.bf16.mxu0 0
    %164 = vmatpush1.bf16.msra.mxu0 0
    %165 = vmatprep.subr.bf16.mxu0 0
    %166 = vmatpush1.bf16.msra.mxu0 0
    %167 = vmatprep.subr.bf16.mxu0 0
    %168 = vmatpush1.bf16.msra.mxu0 0
    %169 = vmatprep.subr.bf16.mxu0 0
    %170 = vmatpush1.bf16.msra.mxu0 0
    %171 = vmatprep.mubr.bf16.mxu0 0
    %172 = vmatmul.mubr.bf16.gmra.mrb[0].mxu0 %v78
    %v173 = vpop.f32.mrb[0].mxu0
    %v174 = vadd.f32 0.0, %v173
    %v175 = vpop.f32.mrb[0].mxu0
    %v176 = vpop.f32.mrb[0].mxu0
    %v177 = vadd.f32 0.0, %v176
    %v178 = vpop.f32.mrb[0].mxu0
    %179 = vdwg.mxu0
    %v180 = vld [vmem:[%s3] sm:$0xf]
    %v181 = vld [vmem:[%s3 + $0x4] sm:$0xf]
    %v182 = vld [vmem:[%s3 + $0x8] sm:$0xf]
    %v183 = vld [vmem:[%s3 + $0xc] sm:$0xf]
    %v188 = vunpack.c.l.b16 %v180
    %v189 = vunpack.c.l.b16 %v181
    %v190 = vunpack.c.l.b16 %v182
    %v191 = vunpack.c.l.b16 %v183
    %v192 = vpack.c.b16 %v189, %v188
    %v193 = vpack.c.b16 %v191, %v190
    %196 = vmatprep.subr.bf16.mxu0 0
    %197 = vmatpush1.bf16.msra.mxu0 %v192
    %198 = vmatprep.subr.bf16.mxu0 0
    %199 = vmatpush1.bf16.msra.mxu0 %v193
    %200 = vmatprep.subr.bf16.mxu0 0
    %201 = vmatpush1.bf16.msra.mxu0 0
    %202 = vmatprep.subr.bf16.mxu0 0
    %203 = vmatpush1.bf16.msra.mxu0 0
    %204 = vmatprep.subr.bf16.mxu0 0
    %205 = vmatpush1.bf16.msra.mxu0 0
    %206 = vmatprep.subr.bf16.mxu0 0
    %207 = vmatpush1.bf16.msra.mxu0 0
    %208 = vmatprep.subr.bf16.mxu0 0
    %209 = vmatpush1.bf16.msra.mxu0 0
    %210 = vmatprep.subr.bf16.mxu0 0
    %211 = vmatpush1.bf16.msra.mxu0 0
    %212 = vmatprep.subr.bf16.mxu0 0
    %213 = vmatpush1.bf16.msra.mxu0 0
    %214 = vmatprep.subr.bf16.mxu0 0
    %215 = vmatpush1.bf16.msra.mxu0 0
    %216 = vmatprep.subr.bf16.mxu0 0
    %217 = vmatpush1.bf16.msra.mxu0 0
    %218 = vmatprep.subr.bf16.mxu0 0
    %219 = vmatpush1.bf16.msra.mxu0 0
    %220 = vmatprep.subr.bf16.mxu0 0
    %221 = vmatpush1.bf16.msra.mxu0 0
    %222 = vmatprep.subr.bf16.mxu0 0
    %223 = vmatpush1.bf16.msra.mxu0 0
    %224 = vmatprep.subr.bf16.mxu0 0
    %225 = vmatpush1.bf16.msra.mxu0 0
    %226 = vmatprep.subr.bf16.mxu0 0
    %227 = vmatpush1.bf16.msra.mxu0 0
    %228 = vmatprep.mubr.bf16.mxu0 0
    %229 = vmatmul.mubr.bf16.gmra.mrb[0].mxu0 %v78
    %v230 = vpop.f32.mrb[0].mxu0
    %v231 = vadd.f32 0.0, %v230
    %v232 = vpop.f32.mrb[0].mxu0
    %v233 = vpop.f32.mrb[0].mxu0
    %v234 = vadd.f32 0.0, %v233
    %v235 = vpop.f32.mrb[0].mxu0
    %236 = vdwg.mxu0
    %v237 = vpack.c.bf16 %v122, %v121
    %v239 = vunpack.c.l.b16 %v237
    %v240 = vunpack.c.h.b16 %v237
    %v241 = vpack.c.b16 %v239, %v239
    %v242 = vpack.c.b16 %v240, %v240
    %v243 = vpack.c.bf16 %v177, %v174
    %v245 = vunpack.c.l.b16 %v243
    %v246 = vunpack.c.h.b16 %v243
    %v247 = vpack.c.b16 %v245, %v245
    %v248 = vpack.c.b16 %v246, %v246
    %v249 = vpack.c.bf16 %v234, %v231
    %v251 = vunpack.c.l.b16 %v249
    %v252 = vunpack.c.h.b16 %v249
    %v253 = vpack.c.b16 %v251, %v251
    %v254 = vpack.c.b16 %v252, %v252
    %v255 = vlaneseq
    %v256 = vshrl.u32 %v255, 7
    %v257 = vlaneseq
    %v258 = vand.u32 %v257, 127
    %vm259 = vcmp.ge.s32.totalorder %v256, %v258
    %vm260 = vcmask 64512
    %v262 = vsel %vm260, %v241, 0
    %v265 = vsel %vm260, %v247, 0
    %267 = vmatprep.subr.bf16.mxu0 0
    %268 = vmatpush1.bf16.xpose.msra.mxu0 %v265
    %269 = vmatprep.subr.bf16.mxu0 0
    %270 = vmatpush1.bf16.xpose.msra.mxu0 0
    %271 = vmatprep.subr.bf16.mxu0 0
    %272 = vmatpush1.bf16.xpose.msra.mxu0 0
    %273 = vmatprep.subr.bf16.mxu0 0
    %274 = vmatpush1.bf16.xpose.msra.mxu0 0
    %275 = vmatprep.subr.bf16.mxu0 0
    %276 = vmatpush1.bf16.xpose.msra.mxu0 0
    %277 = vmatprep.subr.bf16.mxu0 0
    %278 = vmatpush1.bf16.xpose.msra.mxu0 0
    %279 = vmatprep.subr.bf16.mxu0 0
    %280 = vmatpush1.bf16.xpose.msra.mxu0 0
    %281 = vmatprep.subr.bf16.mxu0 0
    %282 = vmatpush1.bf16.xpose.msra.mxu0 0
    %283 = vmatprep.subr.bf16.mxu0 0
    %284 = vmatpush1.bf16.xpose.msra.mxu0 0
    %285 = vmatprep.subr.bf16.mxu0 0
    %286 = vmatpush1.bf16.xpose.msra.mxu0 0
    %287 = vmatprep.subr.bf16.mxu0 0
    %288 = vmatpush1.bf16.xpose.msra.mxu0 0
    %289 = vmatprep.subr.bf16.mxu0 0
    %290 = vmatpush1.bf16.xpose.msra.mxu0 0
    %291 = vmatprep.subr.bf16.mxu0 0
    %292 = vmatpush1.bf16.xpose.msra.mxu0 0
    %293 = vmatprep.subr.bf16.mxu0 0
    %294 = vmatpush1.bf16.xpose.msra.mxu0 0
    %295 = vmatprep.subr.bf16.mxu0 0
    %296 = vmatpush1.bf16.xpose.msra.mxu0 0
    %297 = vmatprep.subr.bf16.mxu0 0
    %298 = vmatpush1.bf16.xpose.msra.mxu0 0
    %299 = vmatprep.mubr.bf16.mxu0 0
    %300 = vmatmul.mubr.bf16.gmra.mrb[0].mxu0 %v262
    %v301 = vpop.f32.mrb[0].mxu0
    %v302 = vadd.f32 0.0, %v301
    %v303 = vpop.f32.mrb[0].mxu0
    %v304 = vpop.f32.mrb[0].mxu0
    %v305 = vpop.f32.mrb[0].mxu0
    %306 = vdwg.mxu0
    %v308 = vsel %vm260, %v242, 0
    %v311 = vsel %vm260, %v248, 0
    %313 = vmatprep.subr.bf16.mxu0 0
    %314 = vmatpush1.bf16.xpose.msra.mxu0 %v311
    %315 = vmatprep.subr.bf16.mxu0 0
    %316 = vmatpush1.bf16.xpose.msra.mxu0 0
    %317 = vmatprep.subr.bf16.mxu0 0
    %318 = vmatpush1.bf16.xpose.msra.mxu0 0
    %319 = vmatprep.subr.bf16.mxu0 0
    %320 = vmatpush1.bf16.xpose.msra.mxu0 0
    %321 = vmatprep.subr.bf16.mxu0 0
    %322 = vmatpush1.bf16.xpose.msra.mxu0 0
    %323 = vmatprep.subr.bf16.mxu0 0
    %324 = vmatpush1.bf16.xpose.msra.mxu0 0
    %325 = vmatprep.subr.bf16.mxu0 0
    %326 = vmatpush1.bf16.xpose.msra.mxu0 0
    %327 = vmatprep.subr.bf16.mxu0 0
    %328 = vmatpush1.bf16.xpose.msra.mxu0 0
    %329 = vmatprep.subr.bf16.mxu0 0
    %330 = vmatpush1.bf16.xpose.msra.mxu0 0
    %331 = vmatprep.subr.bf16.mxu0 0
    %332 = vmatpush1.bf16.xpose.msra.mxu0 0
    %333 = vmatprep.subr.bf16.mxu0 0
    %334 = vmatpush1.bf16.xpose.msra.mxu0 0
    %335 = vmatprep.subr.bf16.mxu0 0
    %336 = vmatpush1.bf16.xpose.msra.mxu0 0
    %337 = vmatprep.subr.bf16.mxu0 0
    %338 = vmatpush1.bf16.xpose.msra.mxu0 0
    %339 = vmatprep.subr.bf16.mxu0 0
    %340 = vmatpush1.bf16.xpose.msra.mxu0 0
    %341 = vmatprep.subr.bf16.mxu0 0
    %342 = vmatpush1.bf16.xpose.msra.mxu0 0
    %343 = vmatprep.subr.bf16.mxu0 0
    %344 = vmatpush1.bf16.xpose.msra.mxu0 0
    %345 = vmatprep.mubr.bf16.mxu0 0
    %346 = vmatmul.mubr.bf16.gmra.mrb[0].mxu0 %v308
    %v347 = vpop.f32.mrb[0].mxu0
    %v348 = vadd.f32 0.0, %v347
    %v349 = vpop.f32.mrb[0].mxu0
    %v350 = vpop.f32.mrb[0].mxu0
    %v351 = vpop.f32.mrb[0].mxu0
    %352 = vdwg.mxu0
    %v353 = vsel %vm259, 1, 0
    %vm354 = vcmp.eq.s32.totalorder %v353, 1
    %v355 = vsel %vm354, %v302, -1e+30
    %v356 = vsel %vm354, %v348, -1e+30
    %v357 = vsel %vm260, %v355, -inf
    %358 = vmax.xlane.f32.xlu0 %v357
    %v359 = vpop.xlane.xlu0 %358
    %v360 = vsel %vm260, %v356, -inf
    %361 = vmax.xlane.f32.xlu0 %v360
    %v362 = vpop.xlane.xlu0 %361
    %v363 = vsub.f32 %v355, %v359
    %v364 = vsub.f32 %v356, %v362
    %v365 = vmul.f32 %v363, 1.442695
    %v366 = vpow.pop %v365
    %v367 = vmul.f32 %v364, 1.442695
    %v368 = vpow.pop %v367
    %v369 = vsel %vm260, %v366, 0.0
    %370 = vadd.xlane.f32.xlu0 %v369
    %v371 = vpop.xlane.xlu0 %370
    %v372 = vsel %vm260, %v368, 0.0
    %373 = vadd.xlane.f32.xlu0 %v372
    %v374 = vpop.xlane.xlu0 %373
    %v375 = vpack.c.bf16 %v366, %v366
    %v376 = vpack.c.bf16 %v368, %v368
    %v378 = vsel %vm260, %v375, 0
    %vm380 = vcmask 1043456
    %v382 = vsel %vm380, %v253, 0
    %384 = vmatprep.subr.bf16.mxu0 0
    %385 = vmatpush1.bf16.msra.mxu0 %v382
    %386 = vmatprep.subr.bf16.mxu0 0
    %387 = vmatpush1.bf16.msra.mxu0 0
    %388 = vmatprep.subr.bf16.mxu0 0
    %389 = vmatpush1.bf16.msra.mxu0 0
    %390 = vmatprep.subr.bf16.mxu0 0
    %391 = vmatpush1.bf16.msra.mxu0 0
    %392 = vmatprep.subr.bf16.mxu0 0
    %393 = vmatpush1.bf16.msra.mxu0 0
    %394 = vmatprep.subr.bf16.mxu0 0
    %395 = vmatpush1.bf16.msra.mxu0 0
    %396 = vmatprep.subr.bf16.mxu0 0
    %397 = vmatpush1.bf16.msra.mxu0 0
    %398 = vmatprep.subr.bf16.mxu0 0
    %399 = vmatpush1.bf16.msra.mxu0 0
    %400 = vmatprep.subr.bf16.mxu0 0
    %401 = vmatpush1.bf16.msra.mxu0 0
    %402 = vmatprep.subr.bf16.mxu0 0
    %403 = vmatpush1.bf16.msra.mxu0 0
    %404 = vmatprep.subr.bf16.mxu0 0
    %405 = vmatpush1.bf16.msra.mxu0 0
    %406 = vmatprep.subr.bf16.mxu0 0
    %407 = vmatpush1.bf16.msra.mxu0 0
    %408 = vmatprep.subr.bf16.mxu0 0
    %409 = vmatpush1.bf16.msra.mxu0 0
    %410 = vmatprep.subr.bf16.mxu0 0
    %411 = vmatpush1.bf16.msra.mxu0 0
    %412 = vmatprep.subr.bf16.mxu0 0
    %413 = vmatpush1.bf16.msra.mxu0 0
    %414 = vmatprep.subr.bf16.mxu0 0
    %415 = vmatpush1.bf16.msra.mxu0 0
    %416 = vmatprep.mubr.bf16.mxu0 0
    %417 = vmatmul.mubr.bf16.gmra.mrb[0].mxu0 %v378
    %v418 = vpop.f32.mrb[0].mxu0
    %v419 = vadd.f32 0.0, %v418
    %v420 = vpop.f32.mrb[0].mxu0
    %v421 = vpop.f32.mrb[0].mxu0
    %v422 = vpop.f32.mrb[0].mxu0
    %423 = vdwg.mxu0
    %v425 = vsel %vm260, %v376, 0
    %v428 = vsel %vm380, %v254, 0
    %430 = vmatprep.subr.bf16.mxu0 0
    %431 = vmatpush1.bf16.msra.mxu0 %v428
    %432 = vmatprep.subr.bf16.mxu0 0
    %433 = vmatpush1.bf16.msra.mxu0 0
    %434 = vmatprep.subr.bf16.mxu0 0
    %435 = vmatpush1.bf16.msra.mxu0 0
    %436 = vmatprep.subr.bf16.mxu0 0
    %437 = vmatpush1.bf16.msra.mxu0 0
    %438 = vmatprep.subr.bf16.mxu0 0
    %439 = vmatpush1.bf16.msra.mxu0 0
    %440 = vmatprep.subr.bf16.mxu0 0
    %441 = vmatpush1.bf16.msra.mxu0 0
    %442 = vmatprep.subr.bf16.mxu0 0
    %443 = vmatpush1.bf16.msra.mxu0 0
    %444 = vmatprep.subr.bf16.mxu0 0
    %445 = vmatpush1.bf16.msra.mxu0 0
    %446 = vmatprep.subr.bf16.mxu0 0
    %447 = vmatpush1.bf16.msra.mxu0 0
    %448 = vmatprep.subr.bf16.mxu0 0
    %449 = vmatpush1.bf16.msra.mxu0 0
    %450 = vmatprep.subr.bf16.mxu0 0
    %451 = vmatpush1.bf16.msra.mxu0 0
    %452 = vmatprep.subr.bf16.mxu0 0
    %453 = vmatpush1.bf16.msra.mxu0 0
    %454 = vmatprep.subr.bf16.mxu0 0
    %455 = vmatpush1.bf16.msra.mxu0 0
    %456 = vmatprep.subr.bf16.mxu0 0
    %457 = vmatpush1.bf16.msra.mxu0 0
    %458 = vmatprep.subr.bf16.mxu0 0
    %459 = vmatpush1.bf16.msra.mxu0 0
    %460 = vmatprep.subr.bf16.mxu0 0
    %461 = vmatpush1.bf16.msra.mxu0 0
    %462 = vmatprep.mubr.bf16.mxu0 0
    %463 = vmatmul.mubr.bf16.gmra.mrb[0].mxu0 %v425
    %v464 = vpop.f32.mrb[0].mxu0
    %v465 = vadd.f32 0.0, %v464
    %v466 = vpop.f32.mrb[0].mxu0
    %v467 = vpop.f32.mrb[0].mxu0
    %v468 = vpop.f32.mrb[0].mxu0
    %469 = vdwg.mxu0
    %v470 = vrcp.pop %v371
    %v471 = vrcp.pop %v374
    %v472 = vmul.f32 %v419, %v470
    %v473 = vmul.f32 %v465, %v471
    %v474 = vpack.c.bf16 %v473, %v472
    %v475 = vld [vmem:[%s4] sm:$0xf]
    %476 = vrot.lane.b32.xlu0 %v241, 120
    %v477 = vpop.permute.xlu0 %476
    %478 = vrot.lane.b32.xlu0 %v247, 120
    %v479 = vpop.permute.xlu0 %478
    %v481 = vsel %vm260, %v477, 0
    %v484 = vsel %vm260, %v479, 0
    %486 = vmatprep.subr.bf16.mxu0 0
    %487 = vmatpush1.bf16.xpose.msra.mxu0 %v484
    %488 = vmatprep.subr.bf16.mxu0 0
    %489 = vmatpush1.bf16.xpose.msra.mxu0 0
    %490 = vmatprep.subr.bf16.mxu0 0
    %491 = vmatpush1.bf16.xpose.msra.mxu0 0
    %492 = vmatprep.subr.bf16.mxu0 0
    %493 = vmatpush1.bf16.xpose.msra.mxu0 0
    %494 = vmatprep.subr.bf16.mxu0 0
    %495 = vmatpush1.bf16.xpose.msra.mxu0 0
    %496 = vmatprep.subr.bf16.mxu0 0
    %497 = vmatpush1.bf16.xpose.msra.mxu0 0
    %498 = vmatprep.subr.bf16.mxu0 0
    %499 = vmatpush1.bf16.xpose.msra.mxu0 0
    %500 = vmatprep.subr.bf16.mxu0 0
    %501 = vmatpush1.bf16.xpose.msra.mxu0 0
    %502 = vmatprep.subr.bf16.mxu0 0
    %503 = vmatpush1.bf16.xpose.msra.mxu0 0
    %504 = vmatprep.subr.bf16.mxu0 0
    %505 = vmatpush1.bf16.xpose.msra.mxu0 0
    %506 = vmatprep.subr.bf16.mxu0 0
    %507 = vmatpush1.bf16.xpose.msra.mxu0 0
    %508 = vmatprep.subr.bf16.mxu0 0
    %509 = vmatpush1.bf16.xpose.msra.mxu0 0
    %510 = vmatprep.subr.bf16.mxu0 0
    %511 = vmatpush1.bf16.xpose.msra.mxu0 0
    %512 = vmatprep.subr.bf16.mxu0 0
    %513 = vmatpush1.bf16.xpose.msra.mxu0 0
    %514 = vmatprep.subr.bf16.mxu0 0
    %515 = vmatpush1.bf16.xpose.msra.mxu0 0
    %516 = vmatprep.subr.bf16.mxu0 0
    %517 = vmatpush1.bf16.xpose.msra.mxu0 0
    %518 = vmatprep.mubr.bf16.mxu0 0
    %519 = vmatmul.mubr.bf16.gmra.mrb[0].mxu0 %v481
    %v520 = vpop.f32.mrb[0].mxu0
    %v521 = vadd.f32 0.0, %v520
    %v522 = vpop.f32.mrb[0].mxu0
    %v523 = vpop.f32.mrb[0].mxu0
    %v524 = vpop.f32.mrb[0].mxu0
    %525 = vdwg.mxu0
    %526 = vrot.lane.b32.xlu0 %v242, 120
    %v527 = vpop.permute.xlu0 %526
    %528 = vrot.lane.b32.xlu0 %v248, 120
    %v529 = vpop.permute.xlu0 %528
    %v531 = vsel %vm260, %v527, 0
    %v534 = vsel %vm260, %v529, 0
    %536 = vmatprep.subr.bf16.mxu0 0
    %537 = vmatpush1.bf16.xpose.msra.mxu0 %v534
    %538 = vmatprep.subr.bf16.mxu0 0
    %539 = vmatpush1.bf16.xpose.msra.mxu0 0
    %540 = vmatprep.subr.bf16.mxu0 0
    %541 = vmatpush1.bf16.xpose.msra.mxu0 0
    %542 = vmatprep.subr.bf16.mxu0 0
    %543 = vmatpush1.bf16.xpose.msra.mxu0 0
    %544 = vmatprep.subr.bf16.mxu0 0
    %545 = vmatpush1.bf16.xpose.msra.mxu0 0
    %546 = vmatprep.subr.bf16.mxu0 0
    %547 = vmatpush1.bf16.xpose.msra.mxu0 0
    %548 = vmatprep.subr.bf16.mxu0 0
    %549 = vmatpush1.bf16.xpose.msra.mxu0 0
    %550 = vmatprep.subr.bf16.mxu0 0
    %551 = vmatpush1.bf16.xpose.msra.mxu0 0
    %552 = vmatprep.subr.bf16.mxu0 0
    %553 = vmatpush1.bf16.xpose.msra.mxu0 0
    %554 = vmatprep.subr.bf16.mxu0 0
    %555 = vmatpush1.bf16.xpose.msra.mxu0 0
    %556 = vmatprep.subr.bf16.mxu0 0
    %557 = vmatpush1.bf16.xpose.msra.mxu0 0
    %558 = vmatprep.subr.bf16.mxu0 0
    %559 = vmatpush1.bf16.xpose.msra.mxu0 0
    %560 = vmatprep.subr.bf16.mxu0 0
    %561 = vmatpush1.bf16.xpose.msra.mxu0 0
    %562 = vmatprep.subr.bf16.mxu0 0
    %563 = vmatpush1.bf16.xpose.msra.mxu0 0
    %564 = vmatprep.subr.bf16.mxu0 0
    %565 = vmatpush1.bf16.xpose.msra.mxu0 0
    %566 = vmatprep.subr.bf16.mxu0 0
    %567 = vmatpush1.bf16.xpose.msra.mxu0 0
    %568 = vmatprep.mubr.bf16.mxu0 0
    %569 = vmatmul.mubr.bf16.gmra.mrb[0].mxu0 %v531
    %v570 = vpop.f32.mrb[0].mxu0
    %v571 = vadd.f32 0.0, %v570
    %v572 = vpop.f32.mrb[0].mxu0
    %v573 = vpop.f32.mrb[0].mxu0
    %v574 = vpop.f32.mrb[0].mxu0
    %575 = vdwg.mxu0
    %v576 = vsel %vm354, %v521, -1e+30
    %v577 = vsel %vm354, %v571, -1e+30
    %v578 = vsel %vm260, %v576, -inf
    %579 = vmax.xlane.f32.xlu0 %v578
    %v580 = vpop.xlane.xlu0 %579
    %v581 = vsel %vm260, %v577, -inf
    %582 = vmax.xlane.f32.xlu0 %v581
    %v583 = vpop.xlane.xlu0 %582
    %v584 = vsub.f32 %v576, %v580
    %v585 = vsub.f32 %v577, %v583
    %v586 = vmul.f32 %v584, 1.442695
    %v587 = vpow.pop %v586
    %v588 = vmul.f32 %v585, 1.442695
    %v589 = vpow.pop %v588
    %v590 = vsel %vm260, %v587, 0.0
    %591 = vadd.xlane.f32.xlu0 %v590
    %v592 = vpop.xlane.xlu0 %591
    %v593 = vsel %vm260, %v589, 0.0
    %594 = vadd.xlane.f32.xlu0 %v593
    %v595 = vpop.xlane.xlu0 %594
    %v596 = vpack.c.bf16 %v587, %v587
    %v597 = vpack.c.bf16 %v589, %v589
    %598 = vrot.lane.b32.xlu0 %v253, 120
    %v599 = vpop.permute.xlu0 %598
    %v601 = vsel %vm260, %v596, 0
    %v604 = vsel %vm380, %v599, 0
    %606 = vmatprep.subr.bf16.mxu0 0
    %607 = vmatpush1.bf16.msra.mxu0 %v604
    %608 = vmatprep.subr.bf16.mxu0 0
    %609 = vmatpush1.bf16.msra.mxu0 0
    %610 = vmatprep.subr.bf16.mxu0 0
    %611 = vmatpush1.bf16.msra.mxu0 0
    %612 = vmatprep.subr.bf16.mxu0 0
    %613 = vmatpush1.bf16.msra.mxu0 0
    %614 = vmatprep.subr.bf16.mxu0 0
    %615 = vmatpush1.bf16.msra.mxu0 0
    %616 = vmatprep.subr.bf16.mxu0 0
    %617 = vmatpush1.bf16.msra.mxu0 0
    %618 = vmatprep.subr.bf16.mxu0 0
    %619 = vmatpush1.bf16.msra.mxu0 0
    %620 = vmatprep.subr.bf16.mxu0 0
    %621 = vmatpush1.bf16.msra.mxu0 0
    %622 = vmatprep.subr.bf16.mxu0 0
    %623 = vmatpush1.bf16.msra.mxu0 0
    %624 = vmatprep.subr.bf16.mxu0 0
    %625 = vmatpush1.bf16.msra.mxu0 0
    %626 = vmatprep.subr.bf16.mxu0 0
    %627 = vmatpush1.bf16.msra.mxu0 0
    %628 = vmatprep.subr.bf16.mxu0 0
    %629 = vmatpush1.bf16.msra.mxu0 0
    %630 = vmatprep.subr.bf16.mxu0 0
    %631 = vmatpush1.bf16.msra.mxu0 0
    %632 = vmatprep.subr.bf16.mxu0 0
    %633 = vmatpush1.bf16.msra.mxu0 0
    %634 = vmatprep.subr.bf16.mxu0 0
    %635 = vmatpush1.bf16.msra.mxu0 0
    %636 = vmatprep.subr.bf16.mxu0 0
    %637 = vmatpush1.bf16.msra.mxu0 0
    %638 = vmatprep.mubr.bf16.mxu0 0
    %639 = vmatmul.mubr.bf16.gmra.mrb[0].mxu0 %v601
    %v640 = vpop.f32.mrb[0].mxu0
    %v641 = vadd.f32 0.0, %v640
    %v642 = vpop.f32.mrb[0].mxu0
    %v643 = vpop.f32.mrb[0].mxu0
    %v644 = vpop.f32.mrb[0].mxu0
    %645 = vdwg.mxu0
    %646 = vrot.lane.b32.xlu0 %v254, 120
    %v647 = vpop.permute.xlu0 %646
    %v649 = vsel %vm260, %v597, 0
    %v652 = vsel %vm380, %v647, 0
    %654 = vmatprep.subr.bf16.mxu0 0
    %655 = vmatpush1.bf16.msra.mxu0 %v652
    %656 = vmatprep.subr.bf16.mxu0 0
    %657 = vmatpush1.bf16.msra.mxu0 0
    %658 = vmatprep.subr.bf16.mxu0 0
    %659 = vmatpush1.bf16.msra.mxu0 0
    %660 = vmatprep.subr.bf16.mxu0 0
    %661 = vmatpush1.bf16.msra.mxu0 0
    %662 = vmatprep.subr.bf16.mxu0 0
    %663 = vmatpush1.bf16.msra.mxu0 0
    %664 = vmatprep.subr.bf16.mxu0 0
    %665 = vmatpush1.bf16.msra.mxu0 0
    %666 = vmatprep.subr.bf16.mxu0 0
    %667 = vmatpush1.bf16.msra.mxu0 0
    %668 = vmatprep.subr.bf16.mxu0 0
    %669 = vmatpush1.bf16.msra.mxu0 0
    %670 = vmatprep.subr.bf16.mxu0 0
    %671 = vmatpush1.bf16.msra.mxu0 0
    %672 = vmatprep.subr.bf16.mxu0 0
    %673 = vmatpush1.bf16.msra.mxu0 0
    %674 = vmatprep.subr.bf16.mxu0 0
    %675 = vmatpush1.bf16.msra.mxu0 0
    %676 = vmatprep.subr.bf16.mxu0 0
    %677 = vmatpush1.bf16.msra.mxu0 0
    %678 = vmatprep.subr.bf16.mxu0 0
    %679 = vmatpush1.bf16.msra.mxu0 0
    %680 = vmatprep.subr.bf16.mxu0 0
    %681 = vmatpush1.bf16.msra.mxu0 0
    %682 = vmatprep.subr.bf16.mxu0 0
    %683 = vmatpush1.bf16.msra.mxu0 0
    %684 = vmatprep.subr.bf16.mxu0 0
    %685 = vmatpush1.bf16.msra.mxu0 0
    %686 = vmatprep.mubr.bf16.mxu0 0
    %687 = vmatmul.mubr.bf16.gmra.mrb[0].mxu0 %v649
    %v688 = vpop.f32.mrb[0].mxu0
    %v689 = vadd.f32 0.0, %v688
    %v690 = vpop.f32.mrb[0].mxu0
    %v691 = vpop.f32.mrb[0].mxu0
    %v692 = vpop.f32.mrb[0].mxu0
    %693 = vdwg.mxu0
    %v694 = vrcp.pop %v592
    %v695 = vrcp.pop %v595
    %v696 = vmul.f32 %v641, %v694
    %v697 = vmul.f32 %v689, %v695
    %v698 = vpack.c.bf16 %v697, %v696
    %v699 = vld [vmem:[%s4 + $0x4] sm:$0xf]
    %v701 = vsel %vm260, %v698, 0
    %v704 = vsel %vm380, %v699, 0
    %706 = vmatprep.subr.bf16.mxu0 0
    %707 = vmatpush1.bf16.msra.mxu0 %v704
    %708 = vmatprep.subr.bf16.mxu0 0
    %709 = vmatpush1.bf16.msra.mxu0 0
    %710 = vmatprep.subr.bf16.mxu0 0
    %711 = vmatpush1.bf16.msra.mxu0 0
    %712 = vmatprep.subr.bf16.mxu0 0
    %713 = vmatpush1.bf16.msra.mxu0 0
    %714 = vmatprep.subr.bf16.mxu0 0
    %715 = vmatpush1.bf16.msra.mxu0 0
    %716 = vmatprep.subr.bf16.mxu0 0
    %717 = vmatpush1.bf16.msra.mxu0 0
    %718 = vmatprep.subr.bf16.mxu0 0
    %719 = vmatpush1.bf16.msra.mxu0 0
    %720 = vmatprep.subr.bf16.mxu0 0
    %721 = vmatpush1.bf16.msra.mxu0 0
    %722 = vmatprep.subr.bf16.mxu0 0
    %723 = vmatpush1.bf16.msra.mxu0 0
    %724 = vmatprep.subr.bf16.mxu0 0
    %725 = vmatpush1.bf16.msra.mxu0 0
    %726 = vmatprep.subr.bf16.mxu0 0
    %727 = vmatpush1.bf16.msra.mxu0 0
    %728 = vmatprep.subr.bf16.mxu0 0
    %729 = vmatpush1.bf16.msra.mxu0 0
    %730 = vmatprep.subr.bf16.mxu0 0
    %731 = vmatpush1.bf16.msra.mxu0 0
    %732 = vmatprep.subr.bf16.mxu0 0
    %733 = vmatpush1.bf16.msra.mxu0 0
    %734 = vmatprep.subr.bf16.mxu0 0
    %735 = vmatpush1.bf16.msra.mxu0 0
    %736 = vmatprep.subr.bf16.mxu0 0
    %737 = vmatpush1.bf16.msra.mxu0 0
    %738 = vmatprep.mubr.bf16.mxu0 0
    %739 = vmatmul.mubr.bf16.gmra.mrb[0].mxu0 %v701
    %v740 = vpop.f32.mrb[0].mxu0
    %v741 = vadd.f32 0.0, %v740
    %v742 = vpop.f32.mrb[0].mxu0
    %v743 = vpop.f32.mrb[0].mxu0
    %v744 = vadd.f32 0.0, %v743
    %v745 = vpop.f32.mrb[0].mxu0
    %746 = vdwg.mxu0
    %v748 = vsel %vm260, %v474, 0
    %v751 = vsel %vm380, %v475, 0
    %753 = vmatprep.subr.bf16.mxu0 0
    %754 = vmatpush1.bf16.msra.mxu0 %v751
    %755 = vmatprep.subr.bf16.mxu0 0
    %756 = vmatpush1.bf16.msra.mxu0 0
    %757 = vmatprep.subr.bf16.mxu0 0
    %758 = vmatpush1.bf16.msra.mxu0 0
    %759 = vmatprep.subr.bf16.mxu0 0
    %760 = vmatpush1.bf16.msra.mxu0 0
    %761 = vmatprep.subr.bf16.mxu0 0
    %762 = vmatpush1.bf16.msra.mxu0 0
    %763 = vmatprep.subr.bf16.mxu0 0
    %764 = vmatpush1.bf16.msra.mxu0 0
    %765 = vmatprep.subr.bf16.mxu0 0
    %766 = vmatpush1.bf16.msra.mxu0 0
    %767 = vmatprep.subr.bf16.mxu0 0
    %768 = vmatpush1.bf16.msra.mxu0 0
    %769 = vmatprep.subr.bf16.mxu0 0
    %770 = vmatpush1.bf16.msra.mxu0 0
    %771 = vmatprep.subr.bf16.mxu0 0
    %772 = vmatpush1.bf16.msra.mxu0 0
    %773 = vmatprep.subr.bf16.mxu0 0
    %774 = vmatpush1.bf16.msra.mxu0 0
    %775 = vmatprep.subr.bf16.mxu0 0
    %776 = vmatpush1.bf16.msra.mxu0 0
    %777 = vmatprep.subr.bf16.mxu0 0
    %778 = vmatpush1.bf16.msra.mxu0 0
    %779 = vmatprep.subr.bf16.mxu0 0
    %780 = vmatpush1.bf16.msra.mxu0 0
    %781 = vmatprep.subr.bf16.mxu0 0
    %782 = vmatpush1.bf16.msra.mxu0 0
    %783 = vmatprep.subr.bf16.mxu0 0
    %784 = vmatpush1.bf16.msra.mxu0 0
    %785 = vmatprep.mubr.bf16.mxu0 0
    %786 = vmatmul.mubr.bf16.gmra.mrb[0].mxu0 %v748
    %v787 = vpop.f32.mrb[0].mxu0
    %v788 = vadd.f32 %v741, %v787
    %v789 = vpop.f32.mrb[0].mxu0
    %v790 = vpop.f32.mrb[0].mxu0
    %v791 = vadd.f32 %v744, %v790
    %v792 = vpop.f32.mrb[0].mxu0
    %793 = vdwg.mxu0
    %794 = vrot.lane.b32.xlu0 %v241, 112
    %v795 = vpop.permute.xlu0 %794
    %796 = vrot.lane.b32.xlu0 %v247, 112
    %v797 = vpop.permute.xlu0 %796
    %v799 = vsel %vm260, %v795, 0
    %v802 = vsel %vm260, %v797, 0
    %804 = vmatprep.subr.bf16.mxu0 0
    %805 = vmatpush1.bf16.xpose.msra.mxu0 %v802
    %806 = vmatprep.subr.bf16.mxu0 0
    %807 = vmatpush1.bf16.xpose.msra.mxu0 0
    %808 = vmatprep.subr.bf16.mxu0 0
    %809 = vmatpush1.bf16.xpose.msra.mxu0 0
    %810 = vmatprep.subr.bf16.mxu0 0
    %811 = vmatpush1.bf16.xpose.msra.mxu0 0
    %812 = vmatprep.subr.bf16.mxu0 0
    %813 = vmatpush1.bf16.xpose.msra.mxu0 0
    %814 = vmatprep.subr.bf16.mxu0 0
    %815 = vmatpush1.bf16.xpose.msra.mxu0 0
    %816 = vmatprep.subr.bf16.mxu0 0
    %817 = vmatpush1.bf16.xpose.msra.mxu0 0
    %818 = vmatprep.subr.bf16.mxu0 0
    %819 = vmatpush1.bf16.xpose.msra.mxu0 0
    %820 = vmatprep.subr.bf16.mxu0 0
    %821 = vmatpush1.bf16.xpose.msra.mxu0 0
    %822 = vmatprep.subr.bf16.mxu0 0
    %823 = vmatpush1.bf16.xpose.msra.mxu0 0
    %824 = vmatprep.subr.bf16.mxu0 0
    %825 = vmatpush1.bf16.xpose.msra.mxu0 0
    %826 = vmatprep.subr.bf16.mxu0 0
    %827 = vmatpush1.bf16.xpose.msra.mxu0 0
    %828 = vmatprep.subr.bf16.mxu0 0
    %829 = vmatpush1.bf16.xpose.msra.mxu0 0
    %830 = vmatprep.subr.bf16.mxu0 0
    %831 = vmatpush1.bf16.xpose.msra.mxu0 0
    %832 = vmatprep.subr.bf16.mxu0 0
    %833 = vmatpush1.bf16.xpose.msra.mxu0 0
    %834 = vmatprep.subr.bf16.mxu0 0
    %835 = vmatpush1.bf16.xpose.msra.mxu0 0
    %836 = vmatprep.mubr.bf16.mxu0 0
    %837 = vmatmul.mubr.bf16.gmra.mrb[0].mxu0 %v799
    %v838 = vpop.f32.mrb[0].mxu0
    %v839 = vadd.f32 0.0, %v838
    %v840 = vpop.f32.mrb[0].mxu0
    %v841 = vpop.f32.mrb[0].mxu0
    %v842 = vpop.f32.mrb[0].mxu0
    %843 = vdwg.mxu0
    %844 = vrot.lane.b32.xlu0 %v242, 112
    %v845 = vpop.permute.xlu0 %844
    %846 = vrot.lane.b32.xlu0 %v248, 112
    %v847 = vpop.permute.xlu0 %846
    %v849 = vsel %vm260, %v845, 0
    %v852 = vsel %vm260, %v847, 0
    %854 = vmatprep.subr.bf16.mxu0 0
    %855 = vmatpush1.bf16.xpose.msra.mxu0 %v852
    %856 = vmatprep.subr.bf16.mxu0 0
    %857 = vmatpush1.bf16.xpose.msra.mxu0 0
    %858 = vmatprep.subr.bf16.mxu0 0
    %859 = vmatpush1.bf16.xpose.msra.mxu0 0
    %860 = vmatprep.subr.bf16.mxu0 0
    %861 = vmatpush1.bf16.xpose.msra.mxu0 0
    %862 = vmatprep.subr.bf16.mxu0 0
    %863 = vmatpush1.bf16.xpose.msra.mxu0 0
    %864 = vmatprep.subr.bf16.mxu0 0
    %865 = vmatpush1.bf16.xpose.msra.mxu0 0
    %866 = vmatprep.subr.bf16.mxu0 0
    %867 = vmatpush1.bf16.xpose.msra.mxu0 0
    %868 = vmatprep.subr.bf16.mxu0 0
    %869 = vmatpush1.bf16.xpose.msra.mxu0 0
    %870 = vmatprep.subr.bf16.mxu0 0
    %871 = vmatpush1.bf16.xpose.msra.mxu0 0
    %872 = vmatprep.subr.bf16.mxu0 0
    %873 = vmatpush1.bf16.xpose.msra.mxu0 0
    %874 = vmatprep.subr.bf16.mxu0 0
    %875 = vmatpush1.bf16.xpose.msra.mxu0 0
    %876 = vmatprep.subr.bf16.mxu0 0
    %877 = vmatpush1.bf16.xpose.msra.mxu0 0
    %878 = vmatprep.subr.bf16.mxu0 0
    %879 = vmatpush1.bf16.xpose.msra.mxu0 0
    %880 = vmatprep.subr.bf16.mxu0 0
    %881 = vmatpush1.bf16.xpose.msra.mxu0 0
    %882 = vmatprep.subr.bf16.mxu0 0
    %883 = vmatpush1.bf16.xpose.msra.mxu0 0
    %884 = vmatprep.subr.bf16.mxu0 0
    %885 = vmatpush1.bf16.xpose.msra.mxu0 0
    %886 = vmatprep.mubr.bf16.mxu0 0
    %887 = vmatmul.mubr.bf16.gmra.mrb[0].mxu0 %v849
    %v888 = vpop.f32.mrb[0].mxu0
    %v889 = vadd.f32 0.0, %v888
    %v890 = vpop.f32.mrb[0].mxu0
    %v891 = vpop.f32.mrb[0].mxu0
    %v892 = vpop.f32.mrb[0].mxu0
    %893 = vdwg.mxu0
    %v894 = vsel %vm354, %v839, -1e+30
    %v895 = vsel %vm354, %v889, -1e+30
    %v896 = vsel %vm260, %v894, -inf
    %897 = vmax.xlane.f32.xlu0 %v896
    %v898 = vpop.xlane.xlu0 %897
    %v899 = vsel %vm260, %v895, -inf
    %900 = vmax.xlane.f32.xlu0 %v899
    %v901 = vpop.xlane.xlu0 %900
    %v902 = vsub.f32 %v894, %v898
    %v903 = vsub.f32 %v895, %v901
    %v904 = vmul.f32 %v902, 1.442695
    %v905 = vpow.pop %v904
    %v906 = vmul.f32 %v903, 1.442695
    %v907 = vpow.pop %v906
    %v908 = vsel %vm260, %v905, 0.0
    %909 = vadd.xlane.f32.xlu0 %v908
    %v910 = vpop.xlane.xlu0 %909
    %v911 = vsel %vm260, %v907, 0.0
    %912 = vadd.xlane.f32.xlu0 %v911
    %v913 = vpop.xlane.xlu0 %912
    %v914 = vpack.c.bf16 %v905, %v905
    %v915 = vpack.c.bf16 %v907, %v907
    %916 = vrot.lane.b32.xlu0 %v253, 112
    %v917 = vpop.permute.xlu0 %916
    %v919 = vsel %vm260, %v914, 0
    %v922 = vsel %vm380, %v917, 0
    %924 = vmatprep.subr.bf16.mxu0 0
    %925 = vmatpush1.bf16.msra.mxu0 %v922
    %926 = vmatprep.subr.bf16.mxu0 0
    %927 = vmatpush1.bf16.msra.mxu0 0
    %928 = vmatprep.subr.bf16.mxu0 0
    %929 = vmatpush1.bf16.msra.mxu0 0
    %930 = vmatprep.subr.bf16.mxu0 0
    %931 = vmatpush1.bf16.msra.mxu0 0
    %932 = vmatprep.subr.bf16.mxu0 0
    %933 = vmatpush1.bf16.msra.mxu0 0
    %934 = vmatprep.subr.bf16.mxu0 0
    %935 = vmatpush1.bf16.msra.mxu0 0
    %936 = vmatprep.subr.bf16.mxu0 0
    %937 = vmatpush1.bf16.msra.mxu0 0
    %938 = vmatprep.subr.bf16.mxu0 0
    %939 = vmatpush1.bf16.msra.mxu0 0
    %940 = vmatprep.subr.bf16.mxu0 0
    %941 = vmatpush1.bf16.msra.mxu0 0
    %942 = vmatprep.subr.bf16.mxu0 0
    %943 = vmatpush1.bf16.msra.mxu0 0
    %944 = vmatprep.subr.bf16.mxu0 0
    %945 = vmatpush1.bf16.msra.mxu0 0
    %946 = vmatprep.subr.bf16.mxu0 0
    %947 = vmatpush1.bf16.msra.mxu0 0
    %948 = vmatprep.subr.bf16.mxu0 0
    %949 = vmatpush1.bf16.msra.mxu0 0
    %950 = vmatprep.subr.bf16.mxu0 0
    %951 = vmatpush1.bf16.msra.mxu0 0
    %952 = vmatprep.subr.bf16.mxu0 0
    %953 = vmatpush1.bf16.msra.mxu0 0
    %954 = vmatprep.subr.bf16.mxu0 0
    %955 = vmatpush1.bf16.msra.mxu0 0
    %956 = vmatprep.mubr.bf16.mxu0 0
    %957 = vmatmul.mubr.bf16.gmra.mrb[0].mxu0 %v919
    %v958 = vpop.f32.mrb[0].mxu0
    %v959 = vadd.f32 0.0, %v958
    %v960 = vpop.f32.mrb[0].mxu0
    %v961 = vpop.f32.mrb[0].mxu0
    %v962 = vpop.f32.mrb[0].mxu0
    %963 = vdwg.mxu0
    %964 = vrot.lane.b32.xlu0 %v254, 112
    %v965 = vpop.permute.xlu0 %964
    %v967 = vsel %vm260, %v915, 0
    %v970 = vsel %vm380, %v965, 0
    %972 = vmatprep.subr.bf16.mxu0 0
    %973 = vmatpush1.bf16.msra.mxu0 %v970
    %974 = vmatprep.subr.bf16.mxu0 0
    %975 = vmatpush1.bf16.msra.mxu0 0
    %976 = vmatprep.subr.bf16.mxu0 0
    %977 = vmatpush1.bf16.msra.mxu0 0
    %978 = vmatprep.subr.bf16.mxu0 0
    %979 = vmatpush1.bf16.msra.mxu0 0
    %980 = vmatprep.subr.bf16.mxu0 0
    %981 = vmatpush1.bf16.msra.mxu0 0
    %982 = vmatprep.subr.bf16.mxu0 0
    %983 = vmatpush1.bf16.msra.mxu0 0
    %984 = vmatprep.subr.bf16.mxu0 0
    %985 = vmatpush1.bf16.msra.mxu0 0
    %986 = vmatprep.subr.bf16.mxu0 0
    %987 = vmatpush1.bf16.msra.mxu0 0
    %988 = vmatprep.subr.bf16.mxu0 0
    %989 = vmatpush1.bf16.msra.mxu0 0
    %990 = vmatprep.subr.bf16.mxu0 0
    %991 = vmatpush1.bf16.msra.mxu0 0
    %992 = vmatprep.subr.bf16.mxu0 0
    %993 = vmatpush1.bf16.msra.mxu0 0
    %994 = vmatprep.subr.bf16.mxu0 0
    %995 = vmatpush1.bf16.msra.mxu0 0
    %996 = vmatprep.subr.bf16.mxu0 0
    %997 = vmatpush1.bf16.msra.mxu0 0
    %998 = vmatprep.subr.bf16.mxu0 0
    %999 = vmatpush1.bf16.msra.mxu0 0
    %1000 = vmatprep.subr.bf16.mxu0 0
    %1001 = vmatpush1.bf16.msra.mxu0 0
    %1002 = vmatprep.subr.bf16.mxu0 0
    %1003 = vmatpush1.bf16.msra.mxu0 0
    %1004 = vmatprep.mubr.bf16.mxu0 0
    %1005 = vmatmul.mubr.bf16.gmra.mrb[0].mxu0 %v967
    %v1006 = vpop.f32.mrb[0].mxu0
    %v1007 = vadd.f32 0.0, %v1006
    %v1008 = vpop.f32.mrb[0].mxu0
    %v1009 = vpop.f32.mrb[0].mxu0
    %v1010 = vpop.f32.mrb[0].mxu0
    %1011 = vdwg.mxu0
    %v1012 = vrcp.pop %v910
    %v1013 = vrcp.pop %v913
    %v1014 = vmul.f32 %v959, %v1012
    %v1015 = vmul.f32 %v1007, %v1013
    %v1016 = vpack.c.bf16 %v1015, %v1014
    %v1017 = vld [vmem:[%s4 + $0x8] sm:$0xf]
    %v1019 = vsel %vm260, %v1016, 0
    %v1022 = vsel %vm380, %v1017, 0
    %1024 = vmatprep.subr.bf16.mxu0 0
    %1025 = vmatpush1.bf16.msra.mxu0 %v1022
    %1026 = vmatprep.subr.bf16.mxu0 0
    %1027 = vmatpush1.bf16.msra.mxu0 0
    %1028 = vmatprep.subr.bf16.mxu0 0
    %1029 = vmatpush1.bf16.msra.mxu0 0
    %1030 = vmatprep.subr.bf16.mxu0 0
    %1031 = vmatpush1.bf16.msra.mxu0 0
    %1032 = vmatprep.subr.bf16.mxu0 0
    %1033 = vmatpush1.bf16.msra.mxu0 0
    %1034 = vmatprep.subr.bf16.mxu0 0
    %1035 = vmatpush1.bf16.msra.mxu0 0
    %1036 = vmatprep.subr.bf16.mxu0 0
    %1037 = vmatpush1.bf16.msra.mxu0 0
    %1038 = vmatprep.subr.bf16.mxu0 0
    %1039 = vmatpush1.bf16.msra.mxu0 0
    %1040 = vmatprep.subr.bf16.mxu0 0
    %1041 = vmatpush1.bf16.msra.mxu0 0
    %1042 = vmatprep.subr.bf16.mxu0 0
    %1043 = vmatpush1.bf16.msra.mxu0 0
    %1044 = vmatprep.subr.bf16.mxu0 0
    %1045 = vmatpush1.bf16.msra.mxu0 0
    %1046 = vmatprep.subr.bf16.mxu0 0
    %1047 = vmatpush1.bf16.msra.mxu0 0
    %1048 = vmatprep.subr.bf16.mxu0 0
    %1049 = vmatpush1.bf16.msra.mxu0 0
    %1050 = vmatprep.subr.bf16.mxu0 0
    %1051 = vmatpush1.bf16.msra.mxu0 0
    %1052 = vmatprep.subr.bf16.mxu0 0
    %1053 = vmatpush1.bf16.msra.mxu0 0
    %1054 = vmatprep.subr.bf16.mxu0 0
    %1055 = vmatpush1.bf16.msra.mxu0 0
    %1056 = vmatprep.mubr.bf16.mxu0 0
    %1057 = vmatmul.mubr.bf16.gmra.mrb[0].mxu0 %v1019
    %v1058 = vpop.f32.mrb[0].mxu0
    %v1059 = vadd.f32 0.0, %v1058
    %v1060 = vpop.f32.mrb[0].mxu0
    %v1061 = vpop.f32.mrb[0].mxu0
    %v1062 = vadd.f32 0.0, %v1061
    %v1063 = vpop.f32.mrb[0].mxu0
    %1064 = vdwg.mxu0
    %v1065 = vadd.f32 %v788, %v1059
    %v1066 = vadd.f32 %v791, %v1062
    %1067 = vrot.lane.b32.xlu0 %v241, 104
    %v1068 = vpop.permute.xlu0 %1067
    %1069 = vrot.lane.b32.xlu0 %v247, 104
    %v1070 = vpop.permute.xlu0 %1069
    %v1072 = vsel %vm260, %v1068, 0
    %v1075 = vsel %vm260, %v1070, 0
    %1077 = vmatprep.subr.bf16.mxu0 0
    %1078 = vmatpush1.bf16.xpose.msra.mxu0 %v1075
    %1079 = vmatprep.subr.bf16.mxu0 0
    %1080 = vmatpush1.bf16.xpose.msra.mxu0 0
    %1081 = vmatprep.subr.bf16.mxu0 0
    %1082 = vmatpush1.bf16.xpose.msra.mxu0 0
    %1083 = vmatprep.subr.bf16.mxu0 0
    %1084 = vmatpush1.bf16.xpose.msra.mxu0 0
    %1085 = vmatprep.subr.bf16.mxu0 0
    %1086 = vmatpush1.bf16.xpose.msra.mxu0 0
    %1087 = vmatprep.subr.bf16.mxu0 0
    %1088 = vmatpush1.bf16.xpose.msra.mxu0 0
    %1089 = vmatprep.subr.bf16.mxu0 0
    %1090 = vmatpush1.bf16.xpose.msra.mxu0 0
    %1091 = vmatprep.subr.bf16.mxu0 0
    %1092 = vmatpush1.bf16.xpose.msra.mxu0 0
    %1093 = vmatprep.subr.bf16.mxu0 0
    %1094 = vmatpush1.bf16.xpose.msra.mxu0 0
    %1095 = vmatprep.subr.bf16.mxu0 0
    %1096 = vmatpush1.bf16.xpose.msra.mxu0 0
    %1097 = vmatprep.subr.bf16.mxu0 0
    %1098 = vmatpush1.bf16.xpose.msra.mxu0 0
    %1099 = vmatprep.subr.bf16.mxu0 0
    %1100 = vmatpush1.bf16.xpose.msra.mxu0 0
    %1101 = vmatprep.subr.bf16.mxu0 0
    %1102 = vmatpush1.bf16.xpose.msra.mxu0 0
    %1103 = vmatprep.subr.bf16.mxu0 0
    %1104 = vmatpush1.bf16.xpose.msra.mxu0 0
    %1105 = vmatprep.subr.bf16.mxu0 0
    %1106 = vmatpush1.bf16.xpose.msra.mxu0 0
    %1107 = vmatprep.subr.bf16.mxu0 0
    %1108 = vmatpush1.bf16.xpose.msra.mxu0 0
    %1109 = vmatprep.mubr.bf16.mxu0 0
    %1110 = vmatmul.mubr.bf16.gmra.mrb[0].mxu0 %v1072
    %v1111 = vpop.f32.mrb[0].mxu0
    %v1112 = vadd.f32 0.0, %v1111
    %v1113 = vpop.f32.mrb[0].mxu0
    %v1114 = vpop.f32.mrb[0].mxu0
    %v1115 = vpop.f32.mrb[0].mxu0
    %1116 = vdwg.mxu0
    %1117 = vrot.lane.b32.xlu0 %v242, 104
    %v1118 = vpop.permute.xlu0 %1117
    %1119 = vrot.lane.b32.xlu0 %v248, 104
    %v1120 = vpop.permute.xlu0 %1119
    %v1122 = vsel %vm260, %v1118, 0
    %v1125 = vsel %vm260, %v1120, 0
    %1127 = vmatprep.subr.bf16.mxu0 0
    %1128 = vmatpush1.bf16.xpose.msra.mxu0 %v1125
    %1129 = vmatprep.subr.bf16.mxu0 0
    %1130 = vmatpush1.bf16.xpose.msra.mxu0 0
    %1131 = vmatprep.subr.bf16.mxu0 0
    %1132 = vmatpush1.bf16.xpose.msra.mxu0 0
    %1133 = vmatprep.subr.bf16.mxu0 0
    %1134 = vmatpush1.bf16.xpose.msra.mxu0 0
    %1135 = vmatprep.subr.bf16.mxu0 0
    %1136 = vmatpush1.bf16.xpose.msra.mxu0 0
    %1137 = vmatprep.subr.bf16.mxu0 0
    %1138 = vmatpush1.bf16.xpose.msra.mxu0 0
    %1139 = vmatprep.subr.bf16.mxu0 0
    %1140 = vmatpush1.bf16.xpose.msra.mxu0 0
    %1141 = vmatprep.subr.bf16.mxu0 0
    %1142 = vmatpush1.bf16.xpose.msra.mxu0 0
    %1143 = vmatprep.subr.bf16.mxu0 0
    %1144 = vmatpush1.bf16.xpose.msra.mxu0 0
    %1145 = vmatprep.subr.bf16.mxu0 0
    %1146 = vmatpush1.bf16.xpose.msra.mxu0 0
    %1147 = vmatprep.subr.bf16.mxu0 0
    %1148 = vmatpush1.bf16.xpose.msra.mxu0 0
    %1149 = vmatprep.subr.bf16.mxu0 0
    %1150 = vmatpush1.bf16.xpose.msra.mxu0 0
    %1151 = vmatprep.subr.bf16.mxu0 0
    %1152 = vmatpush1.bf16.xpose.msra.mxu0 0
    %1153 = vmatprep.subr.bf16.mxu0 0
    %1154 = vmatpush1.bf16.xpose.msra.mxu0 0
    %1155 = vmatprep.subr.bf16.mxu0 0
    %1156 = vmatpush1.bf16.xpose.msra.mxu0 0
    %1157 = vmatprep.subr.bf16.mxu0 0
    %1158 = vmatpush1.bf16.xpose.msra.mxu0 0
    %1159 = vmatprep.mubr.bf16.mxu0 0
    %1160 = vmatmul.mubr.bf16.gmra.mrb[0].mxu0 %v1122
    %v1161 = vpop.f32.mrb[0].mxu0
    %v1162 = vadd.f32 0.0, %v1161
    %v1163 = vpop.f32.mrb[0].mxu0
    %v1164 = vpop.f32.mrb[0].mxu0
    %v1165 = vpop.f32.mrb[0].mxu0
    %1166 = vdwg.mxu0
    %v1167 = vsel %vm354, %v1112, -1e+30
    %v1168 = vsel %vm354, %v1162, -1e+30
    %v1169 = vsel %vm260, %v1167, -inf
    %1170 = vmax.xlane.f32.xlu0 %v1169
    %v1171 = vpop.xlane.xlu0 %1170
    %v1172 = vsel %vm260, %v1168, -inf
    %1173 = vmax.xlane.f32.xlu0 %v1172
    %v1174 = vpop.xlane.xlu0 %1173
    %v1175 = vsub.f32 %v1167, %v1171
    %v1176 = vsub.f32 %v1168, %v1174
    %v1177 = vmul.f32 %v1175, 1.442695
    %v1178 = vpow.pop %v1177
    %v1179 = vmul.f32 %v1176, 1.442695
    %v1180 = vpow.pop %v1179
    %v1181 = vsel %vm260, %v1178, 0.0
    %1182 = vadd.xlane.f32.xlu0 %v1181
    %v1183 = vpop.xlane.xlu0 %1182
    %v1184 = vsel %vm260, %v1180, 0.0
    %1185 = vadd.xlane.f32.xlu0 %v1184
    %v1186 = vpop.xlane.xlu0 %1185
    %v1187 = vpack.c.bf16 %v1178, %v1178
    %v1188 = vpack.c.bf16 %v1180, %v1180
    %1189 = vrot.lane.b32.xlu0 %v253, 104
    %v1190 = vpop.permute.xlu0 %1189
    %v1192 = vsel %vm260, %v1187, 0
    %v1195 = vsel %vm380, %v1190, 0
    %1197 = vmatprep.subr.bf16.mxu0 0
    %1198 = vmatpush1.bf16.msra.mxu0 %v1195
    %1199 = vmatprep.subr.bf16.mxu0 0
    %1200 = vmatpush1.bf16.msra.mxu0 0
    %1201 = vmatprep.subr.bf16.mxu0 0
    %1202 = vmatpush1.bf16.msra.mxu0 0
    %1203 = vmatprep.subr.bf16.mxu0 0
    %1204 = vmatpush1.bf16.msra.mxu0 0
    %1205 = vmatprep.subr.bf16.mxu0 0
    %1206 = vmatpush1.bf16.msra.mxu0 0
    %1207 = vmatprep.subr.bf16.mxu0 0
    %1208 = vmatpush1.bf16.msra.mxu0 0
    %1209 = vmatprep.subr.bf16.mxu0 0
    %1210 = vmatpush1.bf16.msra.mxu0 0
    %1211 = vmatprep.subr.bf16.mxu0 0
    %1212 = vmatpush1.bf16.msra.mxu0 0
    %1213 = vmatprep.subr.bf16.mxu0 0
    %1214 = vmatpush1.bf16.msra.mxu0 0
    %1215 = vmatprep.subr.bf16.mxu0 0
    %1216 = vmatpush1.bf16.msra.mxu0 0
    %1217 = vmatprep.subr.bf16.mxu0 0
    %1218 = vmatpush1.bf16.msra.mxu0 0
    %1219 = vmatprep.subr.bf16.mxu0 0
    %1220 = vmatpush1.bf16.msra.mxu0 0
    %1221 = vmatprep.subr.bf16.mxu0 0
    %1222 = vmatpush1.bf16.msra.mxu0 0
    %1223 = vmatprep.subr.bf16.mxu0 0
    %1224 = vmatpush1.bf16.msra.mxu0 0
    %1225 = vmatprep.subr.bf16.mxu0 0
    %1226 = vmatpush1.bf16.msra.mxu0 0
    %1227 = vmatprep.subr.bf16.mxu0 0
    %1228 = vmatpush1.bf16.msra.mxu0 0
    %1229 = vmatprep.mubr.bf16.mxu0 0
    %1230 = vmatmul.mubr.bf16.gmra.mrb[0].mxu0 %v1192
    %v1231 = vpop.f32.mrb[0].mxu0
    %v1232 = vadd.f32 0.0, %v1231
    %v1233 = vpop.f32.mrb[0].mxu0
    %v1234 = vpop.f32.mrb[0].mxu0
    %v1235 = vpop.f32.mrb[0].mxu0
    %1236 = vdwg.mxu0
    %1237 = vrot.lane.b32.xlu0 %v254, 104
    %v1238 = vpop.permute.xlu0 %1237
    %v1240 = vsel %vm260, %v1188, 0
    %v1243 = vsel %vm380, %v1238, 0
    %1245 = vmatprep.subr.bf16.mxu0 0
    %1246 = vmatpush1.bf16.msra.mxu0 %v1243
    %1247 = vmatprep.subr.bf16.mxu0 0
    %1248 = vmatpush1.bf16.msra.mxu0 0
    %1249 = vmatprep.subr.bf16.mxu0 0
    %1250 = vmatpush1.bf16.msra.mxu0 0
    %1251 = vmatprep.subr.bf16.mxu0 0
    %1252 = vmatpush1.bf16.msra.mxu0 0
    %1253 = vmatprep.subr.bf16.mxu0 0
    %1254 = vmatpush1.bf16.msra.mxu0 0
    %1255 = vmatprep.subr.bf16.mxu0 0
    %1256 = vmatpush1.bf16.msra.mxu0 0
    %1257 = vmatprep.subr.bf16.mxu0 0
    %1258 = vmatpush1.bf16.msra.mxu0 0
    %1259 = vmatprep.subr.bf16.mxu0 0
    %1260 = vmatpush1.bf16.msra.mxu0 0
    %1261 = vmatprep.subr.bf16.mxu0 0
    %1262 = vmatpush1.bf16.msra.mxu0 0
    %1263 = vmatprep.subr.bf16.mxu0 0
    %1264 = vmatpush1.bf16.msra.mxu0 0
    %1265 = vmatprep.subr.bf16.mxu0 0
    %1266 = vmatpush1.bf16.msra.mxu0 0
    %1267 = vmatprep.subr.bf16.mxu0 0
    %1268 = vmatpush1.bf16.msra.mxu0 0
    %1269 = vmatprep.subr.bf16.mxu0 0
    %1270 = vmatpush1.bf16.msra.mxu0 0
    %1271 = vmatprep.subr.bf16.mxu0 0
    %1272 = vmatpush1.bf16.msra.mxu0 0
    %1273 = vmatprep.subr.bf16.mxu0 0
    %1274 = vmatpush1.bf16.msra.mxu0 0
    %1275 = vmatprep.subr.bf16.mxu0 0
    %1276 = vmatpush1.bf16.msra.mxu0 0
    %1277 = vmatprep.mubr.bf16.mxu0 0
    %1278 = vmatmul.mubr.bf16.gmra.mrb[0].mxu0 %v1240
    %v1279 = vpop.f32.mrb[0].mxu0
    %v1280 = vadd.f32 0.0, %v1279
    %v1281 = vpop.f32.mrb[0].mxu0
    %v1282 = vpop.f32.mrb[0].mxu0
    %v1283 = vpop.f32.mrb[0].mxu0
    %1284 = vdwg.mxu0
    %v1285 = vrcp.pop %v1183
    %v1286 = vrcp.pop %v1186
    %v1287 = vmul.f32 %v1232, %v1285
    %v1288 = vmul.f32 %v1280, %v1286
    %v1289 = vpack.c.bf16 %v1288, %v1287
    %v1290 = vld [vmem:[%s4 + $0xc] sm:$0xf]
    %v1292 = vsel %vm260, %v1289, 0
    %v1295 = vsel %vm380, %v1290, 0
    %1297 = vmatprep.subr.bf16.mxu0 0
    %1298 = vmatpush1.bf16.msra.mxu0 %v1295
    %1299 = vmatprep.subr.bf16.mxu0 0
    %1300 = vmatpush1.bf16.msra.mxu0 0
    %1301 = vmatprep.subr.bf16.mxu0 0
    %1302 = vmatpush1.bf16.msra.mxu0 0
    %1303 = vmatprep.subr.bf16.mxu0 0
    %1304 = vmatpush1.bf16.msra.mxu0 0
    %1305 = vmatprep.subr.bf16.mxu0 0
    %1306 = vmatpush1.bf16.msra.mxu0 0
    %1307 = vmatprep.subr.bf16.mxu0 0
    %1308 = vmatpush1.bf16.msra.mxu0 0
    %1309 = vmatprep.subr.bf16.mxu0 0
    %1310 = vmatpush1.bf16.msra.mxu0 0
    %1311 = vmatprep.subr.bf16.mxu0 0
    %1312 = vmatpush1.bf16.msra.mxu0 0
    %1313 = vmatprep.subr.bf16.mxu0 0
    %1314 = vmatpush1.bf16.msra.mxu0 0
    %1315 = vmatprep.subr.bf16.mxu0 0
    %1316 = vmatpush1.bf16.msra.mxu0 0
    %1317 = vmatprep.subr.bf16.mxu0 0
    %1318 = vmatpush1.bf16.msra.mxu0 0
    %1319 = vmatprep.subr.bf16.mxu0 0
    %1320 = vmatpush1.bf16.msra.mxu0 0
    %1321 = vmatprep.subr.bf16.mxu0 0
    %1322 = vmatpush1.bf16.msra.mxu0 0
    %1323 = vmatprep.subr.bf16.mxu0 0
    %1324 = vmatpush1.bf16.msra.mxu0 0
    %1325 = vmatprep.subr.bf16.mxu0 0
    %1326 = vmatpush1.bf16.msra.mxu0 0
    %1327 = vmatprep.subr.bf16.mxu0 0
    %1328 = vmatpush1.bf16.msra.mxu0 0
    %1329 = vmatprep.mubr.bf16.mxu0 0
    %1330 = vmatmul.mubr.bf16.gmra.mrb[0].mxu0 %v1292
    %v1331 = vpop.f32.mrb[0].mxu0
    %v1332 = vadd.f32 0.0, %v1331
    %v1333 = vpop.f32.mrb[0].mxu0
    %v1334 = vpop.f32.mrb[0].mxu0
    %v1335 = vadd.f32 0.0, %v1334
    %v1336 = vpop.f32.mrb[0].mxu0
    %1337 = vdwg.mxu0
    %v1338 = vadd.f32 %v1065, %v1332
    %v1339 = vadd.f32 %v1066, %v1335
    %v1340 = vld [vmem:[%s6] sm:$0x1]
    %v1341 = vld [vmem:[%s7] sm:$0x1]
    %v1342 = vadd.f32 %v57, %v1338
    %v1343 = vadd.f32 %v58, %v1339
    %v1344 = vld [vmem:[%s5] sm:$0x1]
    %v1346 = vlaneseq
    %v1347 = vshrl.u32 %v1346, 7
    %v1348 = vsub.s32 0, %v1347
    %v1349 = vrot.slane %v1344, %v1348
    %v1351 = vadd.f32 %v1342, %v1349
    %v1352 = vadd.f32 %v1343, %v1349
    %v1353 = vsel %vm76, %v1351, 0.0
    %1354 = vadd.xlane.f32.xlu0 %v1353
    %v1355 = vpop.xlane.xlu0 %1354
    %v1356 = vsel %vm76, %v1352, 0.0
    %1357 = vadd.xlane.f32.xlu0 %v1356
    %v1358 = vpop.xlane.xlu0 %1357
    %v1359 = vrcp.pop 32.0
    %v1360 = vmul.f32 %v1355, %v1359
    %v1361 = vmul.f32 %v1358, %v1359
    %v1362 = vsub.f32 %v1351, %v1360
    %v1363 = vsub.f32 %v1352, %v1361
    %v1364 = vmul.f32 %v1362, %v1362
    %v1365 = vmul.f32 %v1363, %v1363
    %v1366 = vsel %vm76, %v1364, 0.0
    %1367 = vadd.xlane.f32.xlu0 %v1366
    %v1368 = vpop.xlane.xlu0 %1367
    %v1369 = vsel %vm76, %v1365, 0.0
    %1370 = vadd.xlane.f32.xlu0 %v1369
    %v1371 = vpop.xlane.xlu0 %1370
    %v1372 = vmul.f32 %v1368, %v1359
    %v1373 = vmul.f32 %v1371, %v1359
    %v1374 = vadd.f32 %v1372, 1e-05
    %v1375 = vadd.f32 %v1373, 1e-05
    %v1376 = vrsqrt.pop %v1374
    %v1377 = vrsqrt.pop %v1375
    %v1378 = vmul.f32 %v1362, %v1376
    %v1379 = vmul.f32 %v1363, %v1377
    %v1381 = vlaneseq
    %v1382 = vshrl.u32 %v1381, 7
    %v1383 = vsub.s32 0, %v1382
    %v1384 = vrot.slane %v1340, %v1383
    %v1386 = vmul.f32 %v1378, %v1384
    %v1387 = vmul.f32 %v1379, %v1384
    %v1389 = vlaneseq
    %v1390 = vshrl.u32 %v1389, 7
    %v1391 = vsub.s32 0, %v1390
    %v1392 = vrot.slane %v1341, %v1391
    %v1394 = vadd.f32 %v1386, %v1392
    %v1395 = vadd.f32 %v1387, %v1392
    %v1396 = vpack.c.bf16 %v1395, %v1394
    %v1397 = vld [vmem:[#allocation2] sm:$0xf]
    %v1398 = vld [vmem:[#allocation2 + $0x4] sm:$0xf]
    %v1399 = vld [vmem:[#allocation2 + $0x8] sm:$0xf]
    %v1400 = vld [vmem:[#allocation2 + $0xc] sm:$0xf]
    %v1401 = vld [vmem:[%s9] sm:$0x1]
    %v1403 = vlaneseq
    %v1404 = vshrl.u32 %v1403, 7
    %v1405 = vsub.s32 0, %v1404
    %v1406 = vrot.slane %v1401, %v1405
    %v1412 = vunpack.c.l.b16 %v1397
    %v1413 = vunpack.c.l.b16 %v1398
    %v1414 = vunpack.c.l.b16 %v1399
    %v1415 = vunpack.c.l.b16 %v1400
    %v1416 = vpack.c.b16 %v1413, %v1412
    %v1417 = vpack.c.b16 %v1415, %v1414
    %v1421 = vsel %vm76, %v1396, 0
    %1423 = vmatprep.subr.bf16.mxu0 0
    %1424 = vmatpush1.bf16.msra.mxu0 %v1416
    %1425 = vmatprep.subr.bf16.mxu0 0
    %1426 = vmatpush1.bf16.msra.mxu0 %v1417
    %1427 = vmatprep.subr.bf16.mxu0 0
    %1428 = vmatpush1.bf16.msra.mxu0 0
    %1429 = vmatprep.subr.bf16.mxu0 0
    %1430 = vmatpush1.bf16.msra.mxu0 0
    %1431 = vmatprep.subr.bf16.mxu0 0
    %1432 = vmatpush1.bf16.msra.mxu0 0
    %1433 = vmatprep.subr.bf16.mxu0 0
    %1434 = vmatpush1.bf16.msra.mxu0 0
    %1435 = vmatprep.subr.bf16.mxu0 0
    %1436 = vmatpush1.bf16.msra.mxu0 0
    %1437 = vmatprep.subr.bf16.mxu0 0
    %1438 = vmatpush1.bf16.msra.mxu0 0
    %1439 = vmatprep.subr.bf16.mxu0 0
    %1440 = vmatpush1.bf16.msra.mxu0 0
    %1441 = vmatprep.subr.bf16.mxu0 0
    %1442 = vmatpush1.bf16.msra.mxu0 0
    %1443 = vmatprep.subr.bf16.mxu0 0
    %1444 = vmatpush1.bf16.msra.mxu0 0
    %1445 = vmatprep.subr.bf16.mxu0 0
    %1446 = vmatpush1.bf16.msra.mxu0 0
    %1447 = vmatprep.subr.bf16.mxu0 0
    %1448 = vmatpush1.bf16.msra.mxu0 0
    %1449 = vmatprep.subr.bf16.mxu0 0
    %1450 = vmatpush1.bf16.msra.mxu0 0
    %1451 = vmatprep.subr.bf16.mxu0 0
    %1452 = vmatpush1.bf16.msra.mxu0 0
    %1453 = vmatprep.subr.bf16.mxu0 0
    %1454 = vmatpush1.bf16.msra.mxu0 0
    %1455 = vmatprep.mubr.bf16.mxu0 0
    %1456 = vmatmul.mubr.bf16.gmra.mrb[0].mxu0 %v1421
    %v1457 = vpop.f32.mrb[0].mxu0
    %v1458 = vadd.f32 %v1406, %v1457
    %v1459 = vpop.f32.mrb[0].mxu0
    %v1460 = vpop.f32.mrb[0].mxu0
    %v1461 = vadd.f32 %v1406, %v1460
    %v1462 = vpop.f32.mrb[0].mxu0
    %1463 = vdwg.mxu0
    %v1464 = vmax.f32 %v1458, 0.0
    %v1465 = vmax.f32 %v1461, 0.0
    %v1466 = vpack.c.bf16 %v1465, %v1464
    %v1467 = vld [vmem:[%s10] sm:$0xf]
    %v1468 = vld [vmem:[%s10 + $0x4] sm:$0xf]
    %v1469 = vld [vmem:[%s10 + $0x8] sm:$0xf]
    %v1470 = vld [vmem:[%s10 + $0xc] sm:$0xf]
    %v1471 = vld [vmem:[%s10 + $0x10] sm:$0xf]
    %v1472 = vld [vmem:[%s10 + $0x14] sm:$0xf]
    %v1473 = vld [vmem:[%s10 + $0x18] sm:$0xf]
    %v1474 = vld [vmem:[%s10 + $0x1c] sm:$0xf]
    %v1475 = vld [vmem:[%s10 + $0x20] sm:$0xf]
    %v1476 = vld [vmem:[%s10 + $0x24] sm:$0xf]
    %v1477 = vld [vmem:[%s10 + $0x28] sm:$0xf]
    %v1478 = vld [vmem:[%s10 + $0x2c] sm:$0xf]
    %v1479 = vld [vmem:[%s10 + $0x30] sm:$0xf]
    %v1480 = vld [vmem:[%s10 + $0x34] sm:$0xf]
    %v1481 = vld [vmem:[%s10 + $0x38] sm:$0xf]
    %v1482 = vld [vmem:[%s10 + $0x3c] sm:$0xf]
    %v1499 = vunpack.c.l.b16 %v1467
    %v1500 = vunpack.c.l.b16 %v1468
    %v1501 = vunpack.c.l.b16 %v1469
    %v1502 = vunpack.c.l.b16 %v1470
    %v1503 = vunpack.c.l.b16 %v1471
    %v1504 = vunpack.c.l.b16 %v1472
    %v1505 = vunpack.c.l.b16 %v1473
    %v1506 = vunpack.c.l.b16 %v1474
    %v1507 = vunpack.c.l.b16 %v1475
    %v1508 = vunpack.c.l.b16 %v1476
    %v1509 = vunpack.c.l.b16 %v1477
    %v1510 = vunpack.c.l.b16 %v1478
    %v1511 = vunpack.c.l.b16 %v1479
    %v1512 = vunpack.c.l.b16 %v1480
    %v1513 = vunpack.c.l.b16 %v1481
    %v1514 = vunpack.c.l.b16 %v1482
    %v1515 = vpack.c.b16 %v1500, %v1499
    %v1516 = vpack.c.b16 %v1502, %v1501
    %v1517 = vpack.c.b16 %v1504, %v1503
    %v1518 = vpack.c.b16 %v1506, %v1505
    %v1519 = vpack.c.b16 %v1508, %v1507
    %v1520 = vpack.c.b16 %v1510, %v1509
    %v1521 = vpack.c.b16 %v1512, %v1511
    %v1522 = vpack.c.b16 %v1514, %v1513
    %1531 = vmatprep.subr.bf16.mxu0 0
    %1532 = vmatpush1.bf16.msra.mxu0 %v1515
    %1533 = vmatprep.subr.bf16.mxu0 0
    %1534 = vmatpush1.bf16.msra.mxu0 %v1516
    %1535 = vmatprep.subr.bf16.mxu0 0
    %1536 = vmatpush1.bf16.msra.mxu0 %v1517
    %1537 = vmatprep.subr.bf16.mxu0 0
    %1538 = vmatpush1.bf16.msra.mxu0 %v1518
    %1539 = vmatprep.subr.bf16.mxu0 0
    %1540 = vmatpush1.bf16.msra.mxu0 %v1519
    %1541 = vmatprep.subr.bf16.mxu0 0
    %1542 = vmatpush1.bf16.msra.mxu0 %v1520
    %1543 = vmatprep.subr.bf16.mxu0 0
    %1544 = vmatpush1.bf16.msra.mxu0 %v1521
    %1545 = vmatprep.subr.bf16.mxu0 0
    %1546 = vmatpush1.bf16.msra.mxu0 %v1522
    %1547 = vmatprep.subr.bf16.mxu0 0
    %1548 = vmatpush1.bf16.msra.mxu0 0
    %1549 = vmatprep.subr.bf16.mxu0 0
    %1550 = vmatpush1.bf16.msra.mxu0 0
    %1551 = vmatprep.subr.bf16.mxu0 0
    %1552 = vmatpush1.bf16.msra.mxu0 0
    %1553 = vmatprep.subr.bf16.mxu0 0
    %1554 = vmatpush1.bf16.msra.mxu0 0
    %1555 = vmatprep.subr.bf16.mxu0 0
    %1556 = vmatpush1.bf16.msra.mxu0 0
    %1557 = vmatprep.subr.bf16.mxu0 0
    %1558 = vmatpush1.bf16.msra.mxu0 0
    %1559 = vmatprep.subr.bf16.mxu0 0
    %1560 = vmatpush1.bf16.msra.mxu0 0
    %1561 = vmatprep.subr.bf16.mxu0 0
    %1562 = vmatpush1.bf16.msra.mxu0 0
    %1563 = vmatprep.mubr.bf16.mxu0 0
    %1564 = vmatmul.mubr.bf16.gmra.mrb[0].mxu0 %v1466
    %v1565 = vpop.f32.mrb[0].mxu0
    %v1566 = vadd.f32 0.0, %v1565
    %v1567 = vpop.f32.mrb[0].mxu0
    %v1568 = vpop.f32.mrb[0].mxu0
    %v1569 = vadd.f32 0.0, %v1568
    %v1570 = vpop.f32.mrb[0].mxu0
    %1571 = vdwg.mxu0
    %v1572 = vadd.f32 %v1394, %v1566
    %v1573 = vadd.f32 %v1395, %v1569
    %v1574 = vld [vmem:[%s11] sm:$0x1]
    %v1576 = vlaneseq
    %v1577 = vshrl.u32 %v1576, 7
    %v1578 = vsub.s32 0, %v1577
    %v1579 = vrot.slane %v1574, %v1578
    %v1581 = vadd.f32 %v1572, %v1579
    %v1582 = vadd.f32 %v1573, %v1579
    %v1583 = vsel %vm76, %v1581, 0.0
    %1584 = vadd.xlane.f32.xlu0 %v1583
    %v1585 = vpop.xlane.xlu0 %1584
    %v1586 = vsel %vm76, %v1582, 0.0
    %1587 = vadd.xlane.f32.xlu0 %v1586
    %v1588 = vpop.xlane.xlu0 %1587
    %v1589 = vmul.f32 %v1585, %v1359
    %v1590 = vmul.f32 %v1588, %v1359
    %v1591 = vsub.f32 %v1581, %v1589
    %v1592 = vsub.f32 %v1582, %v1590
    %v1593 = vmul.f32 %v1591, %v1591
    %v1594 = vmul.f32 %v1592, %v1592
    %v1595 = vsel %vm76, %v1593, 0.0
    %1596 = vadd.xlane.f32.xlu0 %v1595
    %v1597 = vpop.xlane.xlu0 %1596
    %v1598 = vsel %vm76, %v1594, 0.0
    %1599 = vadd.xlane.f32.xlu0 %v1598
    %v1600 = vpop.xlane.xlu0 %1599
    %v1601 = vmul.f32 %v1597, %v1359
    %v1602 = vmul.f32 %v1600, %v1359
    %v1603 = vadd.f32 %v1601, 1e-05
    %v1604 = vadd.f32 %v1602, 1e-05
    %v1605 = vrsqrt.pop %v1603
    %v1606 = vrsqrt.pop %v1604
    %v1607 = vmul.f32 %v1591, %v1605
    %v1608 = vmul.f32 %v1592, %v1606
    %v1609 = vmul.f32 %v1607, %v1384
    %v1610 = vmul.f32 %v1608, %v1384
    %v1611 = vadd.f32 %v1609, %v1392
    %v1612 = vadd.f32 %v1610, %v1392
    %1613 = vst.msk [vmem:[#allocation5] sm:$0xff] %vm76, %v1611
    %1614 = vst.msk [vmem:[#allocation5 + $0x8] sm:$0xff] %vm76, %v1612
    // Predicated region
    $region54: #{tpu_custom_call.1} parent=1 // pred_check
      _
    $region55: #{tpu_custom_call.1} parent=1 // pred_check_branch
      %1616 = sbr.rel (0) target = $region57
    $region56: #{tpu_custom_call.1} parent=1 // pred_region
      %s1618 = ssub.s32 256, 256
      %1619 = vsyncadd [#allocation4], %s1618
      %s1620 = sshll.u32 [#allocation5], 4
      %s1621 = int_to_ptr.vmem [resolvable:$true] %s1620
      %1626 = dma.vmem_to_hbm [thread:$0]  %s1621, 256, %s12, [#allocation4], 128, 128, 8
    $region57: #{tpu_custom_call.1} parent=1 // pred_fallthru
      _
    // Predicated region
    $region58: #{tpu_custom_call.1} parent=1 // pred_check
      _
    $region59: #{tpu_custom_call.1} parent=1 // pred_check_branch
      %1628 = sbr.rel (0) target = $region61
    $region60: #{tpu_custom_call.1} parent=1 // pred_region
      %1629 = dma.done [#allocation4], 256
    $region61: #{tpu_custom_call.1} parent=1 // pred_fallthru
      _
    %1630 = vsyncpa [#allocation3], 1
    %1631 = vsyncpa [#allocation4], 1

</llo_original>
